<compile_context>
chip_gen: v7x
topology: tpu7x:2x2x1
jax: 0.10.0
libtpu: 0.0.40
codegen_flags: <defaults>
</compile_context>

<pallas_src>
import functools
import math

import jax
import jax.numpy as jnp
from jax import lax
from jax.experimental import pallas as pl
from jax.experimental.pallas import tpu as pltpu


def _causal_attn_kernel(x_ref, wqkv_ref, bqkv_ref, wproj_ref, bproj_ref, o_ref,
                        *, n_head):
    # Per grid step (one batch element):
    #   x_ref:     (T, C)
    #   wqkv_ref:  (C, 3C)     1/sqrt(hd) already folded into the q columns
    #   bqkv_ref:  (1, 3C)
    #   wproj_ref: (C, Npad)   output projection, N padded to a multiple of 128
    #   bproj_ref: (1, Npad)
    #   o_ref:     (T, Npad)   lane-dense output
    T, C = x_ref.shape
    n_pad = o_ref.shape[1]
    hd = C // n_head

    x = x_ref[...]

    # qkv projection: (T, C) @ (C, 3C) + b -> (T, 3C)   (q pre-scaled)
    qkv = jnp.dot(x, wqkv_ref[...], preferred_element_type=jnp.float32)
    qkv = qkv + bqkv_ref[...]

    # Additive causal mask, built once and reused by every head.
    # NOTE: finite -1e30 (not -inf) is safe because the diagonal is never
    # masked; a fully-masked padding row would silently become uniform.
    row = lax.broadcasted_iota(jnp.int32, (T, T), 0)
    col = lax.broadcasted_iota(jnp.int32, (T, T), 1)
    mask_bias = jnp.where(row >= col, jnp.float32(0.0), jnp.float32(-1e30))

    # Accumulator initialised from the broadcast output-projection bias: the
    # final store is then a pure cast + full-width vst.
    acc = jnp.broadcast_to(bproj_ref[...], (T, n_pad)).astype(jnp.float32)

    for h in range(n_head):                      # static unroll, n_head small
        lo, hi = h * hd, (h + 1) * hd
        q_h = qkv[:, lo:hi]                      # (T, hd), scale pre-folded
        k_h = qkv[:, C + lo:C + hi]
        v_h = qkv[:, 2 * C + lo:2 * C + hi]
        # TODO(synk): at hd=8 these lane slices are lane-masked copies, not
        # free views; for larger n_head/hd put heads on a sublane axis so the
        # slices land on (8,128) tile boundaries.

        # scores: q_h @ k_h^T (contract last dims; no materialized transpose)
        s = lax.dot_general(q_h, k_h, (((1,), (1,)), ((), ())),
                            preferred_element_type=jnp.float32)   # (T, T)
        s = s + mask_bias

        # numerically stable softmax; reciprocal on the EUP + 1 Newton step
        m = jnp.max(s, axis=-1, keepdims=True)
        p = jnp.exp(s - m)
        denom = jnp.sum(p, axis=-1, keepdims=True)
        r = pl.reciprocal(denom, approx=True)
        r = r * (2.0 - denom * r)                # refine -> ~f32 accurate
        att = p * r                              # (T, T)

        # Reassociated epilogue:
        #   concat_h(att_h @ v_h) @ W == sum_h att_h @ (v_h @ W[lo:hi, :])
        # Both matmuls now produce full 128-lane (T, Npad) results.
        vw_h = jnp.dot(v_h, wproj_ref[lo:hi, :],
                       preferred_element_type=jnp.float32)        # (T, Npad)
        acc = acc + jnp.dot(att, vw_h, preferred_element_type=jnp.float32)

    o_ref[...] = acc.astype(o_ref.dtype)


def causal_self_attention(x, w_attn, b_attn, w_proj, b_proj, n_head):
    """x: (B, T, C); w_attn: (C, 3C); b_attn: (3C,); w_proj: (C, C); b_proj: (C,).

    Weights use (in_features, out_features) layout (pre-transposed from
    PyTorch nn.Linear's (out, in)), so the kernel computes x @ W + b.
    """
    B, T, C = x.shape
    hd = C // n_head
    n_pad = ((C + 127) // 128) * 128   # lane-dense output width

    # ---- One-time parameter prep (load-time, not the hot path) ----
    # Fold 1/sqrt(hd) into the q columns of the qkv projection.
    scale = 1.0 / math.sqrt(hd)
    col_scale = jnp.concatenate(
        [jnp.full((C,), scale, dtype=w_attn.dtype),
         jnp.ones((2 * C,), dtype=w_attn.dtype)])
    w_attn_s = w_attn * col_scale[None, :]
    b_attn_s = (b_attn * col_scale).reshape(1, 3 * C)
    # Pad the output projection to a 128-lane-wide N (padded columns are free).
    w_proj_p = jnp.pad(w_proj, ((0, 0), (0, n_pad - C)))
    b_proj_p = jnp.pad(b_proj, (0, n_pad - C)).reshape(1, n_pad)

    flops = (2 * B * T * C * 3 * C
             + B * n_head * (2 * T * T * hd          # q @ k^T
                             + 2 * T * hd * n_pad    # v_h @ Wproj slice
                             + 2 * T * T * n_pad))   # att @ (v_h @ W)
    transcendentals = B * n_head * (T * T + T)       # exp + reciprocal
    bytes_accessed = 4 * (B * T * C + C * 3 * C + 3 * C
                          + C * n_pad + n_pad + B * T * n_pad)

    kernel = functools.partial(_causal_attn_kernel, n_head=n_head)
    out = pl.pallas_call(
        kernel,
        out_shape=jax.ShapeDtypeStruct((B, T, n_pad), x.dtype),
        grid_spec=pltpu.PrefetchScalarGridSpec(
            num_scalar_prefetch=0,
            grid=(B,),
            in_specs=[
                pl.BlockSpec((None, T, C), lambda b: (b, 0, 0)),   # x (per batch)
                pl.BlockSpec((C, 3 * C), lambda b: (0, 0)),        # w_attn (resident)
                pl.BlockSpec((1, 3 * C), lambda b: (0, 0)),        # b_attn
                pl.BlockSpec((C, n_pad), lambda b: (0, 0)),        # w_proj
                pl.BlockSpec((1, n_pad), lambda b: (0, 0)),        # b_proj
            ],
            out_specs=pl.BlockSpec((None, T, n_pad), lambda b: (b, 0, 0)),
        ),
        compiler_params=pltpu.CompilerParams(
            dimension_semantics=("parallel",)),
        cost_estimate=pl.CostEstimate(flops=flops,
                                      transcendentals=transcendentals,
                                      bytes_accessed=bytes_accessed),
    )(x, w_attn_s, b_attn_s, w_proj_p, b_proj_p)

    # NOTE: in a multi-layer model, hand the lane-dense (B, T, n_pad) slab to
    # the consumer instead of slicing back to C here; the slice is kept only to
    # honor the module's (B, T, C) return contract.
    return out[:, :, :C]


def _reference(x, w_attn, b_attn, w_proj, b_proj, n_head):
    """Pure-JAX reference mirroring the PyTorch forward exactly."""
    B, T, C = x.shape
    hd = C // n_head
    with jax.default_matmul_precision("highest"):
        qkv = x @ w_attn + b_attn                                     # (B, T, 3C)
        q, k, v = jnp.split(qkv, 3, axis=2)

        def heads(t):
            return t.reshape(B, T, n_head, hd).transpose(0, 2, 1, 3)  # (B, nh, T, hd)

        q, k, v = heads(q), heads(k), heads(v)
        att = (q @ k.transpose(0, 1, 3, 2)) * (1.0 / math.sqrt(hd))
        mask = jnp.tril(jnp.ones((T, T), dtype=bool))[None, None]
        att = jnp.where(mask, att, -jnp.inf)
        att = jax.nn.softmax(att, axis=-1)
        y = (att @ v).transpose(0, 2, 1, 3).reshape(B, T, C)
        return y @ w_proj + b_proj


if __name__ == "__main__":
    # Small config consistent with the module: n_embd=32, n_head=4, block_size>=T.
    B, T, C, n_head = 2, 8, 32, 4

    key = jax.random.PRNGKey(0)
    kx, k1, k2, k3, k4 = jax.random.split(key, 5)

    x = jax.random.normal(kx, (B, T, C), dtype=jnp.float32)
    # Deterministic synthetic parameters (shapes from nn.Linear(C, 3C) / (C, C)),
    # stored already-transposed to (in, out).
    w_attn = jax.random.normal(k1, (C, 3 * C), dtype=jnp.float32) * 0.02
    b_attn = jax.random.normal(k2, (3 * C,), dtype=jnp.float32) * 0.02
    w_proj = jax.random.normal(k3, (C, C), dtype=jnp.float32) * 0.02
    b_proj = jax.random.normal(k4, (C,), dtype=jnp.float32) * 0.02

    out = causal_self_attention(x, w_attn, b_attn, w_proj, b_proj, n_head)
    out = jax.block_until_ready(out)

    ref = _reference(x, w_attn, b_attn, w_proj, b_proj, n_head)
    assert out.shape == (B, T, C)
    # Tolerance tightened vs. the previous 1e-3: kernel matmuls accumulate in
    # f32 and the Newton-refined reciprocal is ~f32 accurate, so only MXU pass
    # rounding and the (mathematically exact) reassociations remain.
    assert jnp.allclose(out, ref, atol=1e-4, rtol=1e-4), "mismatch vs JAX reference"

    print("KERNEL_OK")
</pallas_src>

<mosaic_0001>
module attributes {stable_mosaic.version = 11 : i64} {
  func.func @_causal_attn_kernel(%arg0: i32, %arg1: memref<1x8x32xf32, #tpu.memory_space<vmem>>, %arg2: memref<32x96xf32, #tpu.memory_space<vmem>>, %arg3: memref<1x96xf32, #tpu.memory_space<vmem>>, %arg4: memref<32x128xf32, #tpu.memory_space<vmem>>, %arg5: memref<1x128xf32, #tpu.memory_space<vmem>>, %arg6: memref<1x8x128xf32, #tpu.memory_space<vmem>>) attributes {dimension_semantics = [#tpu.dimension_semantics<parallel>], iteration_bounds = array<i64: 2>, scalar_prefetch = 0 : i64, scratch_operands = 0 : i64, tpu.core_type = #tpu.core_type<tc>, window_params = [{transform_indices = @transform_0, window_bounds = array<i64: 1, 8, 32>}, {pipeline_mode = #tpu.pipeline_mode<synchronous>, transform_indices = @transform_1, window_bounds = array<i64: 32, 96>}, {pipeline_mode = #tpu.pipeline_mode<synchronous>, transform_indices = @transform_2, window_bounds = array<i64: 1, 96>}, {pipeline_mode = #tpu.pipeline_mode<synchronous>, transform_indices = @transform_3, window_bounds = array<i64: 32, 128>}, {pipeline_mode = #tpu.pipeline_mode<synchronous>, transform_indices = @transform_4, window_bounds = array<i64: 1, 128>}, {transform_indices = @transform_5, window_bounds = array<i64: 1, 8, 128>}]} {
    %c0 = arith.constant 0 : index
    %c0_0 = arith.constant 0 : index
    %c0_1 = arith.constant 0 : index
    %0 = vector.load %arg1[%c0, %c0_0, %c0_1] : memref<1x8x32xf32, #tpu.memory_space<vmem>>, vector<1x8x32xf32>
    %1 = vector.shape_cast %0 : vector<1x8x32xf32> to vector<8x32xf32>
    %c0_2 = arith.constant 0 : index
    %c0_3 = arith.constant 0 : index
    %2 = vector.load %arg2[%c0_2, %c0_3] : memref<32x96xf32, #tpu.memory_space<vmem>>, vector<32x96xf32>
    %cst = arith.constant dense<0.000000e+00> : vector<8x96xf32>
    %3 = tpu.matmul %1, %2, %cst {dimension_numbers = #tpu.dot_dimension_numbers<[1], [0], [0], [1], [0, 0, 1, 1], [], []>} : vector<8x32xf32>, vector<32x96xf32>, vector<8x96xf32> -> vector<8x96xf32>
    %c0_4 = arith.constant 0 : index
    %c0_5 = arith.constant 0 : index
    %4 = vector.load %arg3[%c0_4, %c0_5] : memref<1x96xf32, #tpu.memory_space<vmem>>, vector<1x96xf32>
    %5 = vector.broadcast %4 : vector<1x96xf32> to vector<8x96xf32>
    %6 = arith.addf %3, %5 : vector<8x96xf32>
    %7 = tpu.iota {dimensions = array<i32: 0>} : vector<8x8xi32>
    %8 = tpu.iota {dimensions = array<i32: 1>} : vector<8x8xi32>
    %9 = arith.cmpi sge, %7, %8 : vector<8x8xi32>
    %cst_6 = arith.constant 0.000000e+00 : f32
    %cst_7 = arith.constant -1.000000e+30 : f32
    %10 = vector.broadcast %cst_6 : f32 to vector<8x8xf32>
    %11 = vector.broadcast %cst_7 : f32 to vector<8x8xf32>
    %12 = arith.select %9, %10, %11 : vector<8x8xi1>, vector<8x8xf32>
    %c0_8 = arith.constant 0 : index
    %c0_9 = arith.constant 0 : index
    %13 = vector.load %arg5[%c0_8, %c0_9] : memref<1x128xf32, #tpu.memory_space<vmem>>, vector<1x128xf32>
    %14 = vector.shape_cast %13 : vector<1x128xf32> to vector<1x128xf32>
    %15 = vector.broadcast %14 : vector<1x128xf32> to vector<8x128xf32>
    %16 = vector.extract_strided_slice %6 {offsets = [0, 0], sizes = [8, 8], strides = [1, 1]} : vector<8x96xf32> to vector<8x8xf32>
    %17 = vector.extract_strided_slice %6 {offsets = [0, 32], sizes = [8, 8], strides = [1, 1]} : vector<8x96xf32> to vector<8x8xf32>
    %18 = vector.extract_strided_slice %6 {offsets = [0, 64], sizes = [8, 8], strides = [1, 1]} : vector<8x96xf32> to vector<8x8xf32>
    %cst_10 = arith.constant dense<0.000000e+00> : vector<8x8xf32>
    %19 = tpu.matmul %16, %17, %cst_10 {dimension_numbers = #tpu.dot_dimension_numbers<[1], [1], [0], [0], [0, 0, 1, 0], [], []>} : vector<8x8xf32>, vector<8x8xf32>, vector<8x8xf32> -> vector<8x8xf32>
    %20 = arith.addf %19, %12 : vector<8x8xf32>
    %cst_11 = arith.constant dense<0xFF800000> : vector<8xf32>
    %21 = vector.multi_reduction <maximumf>, %20, %cst_11 [1] : vector<8x8xf32> to vector<8xf32>
    %22 = vector.shape_cast %21 : vector<8xf32> to vector<8x1xf32>
    %23 = vector.broadcast %22 : vector<8x1xf32> to vector<8x8xf32>
    %24 = arith.subf %20, %23 : vector<8x8xf32>
    %25 = math.exp %24 : vector<8x8xf32>
    %cst_12 = arith.constant dense<0.000000e+00> : vector<8xf32>
    %26 = vector.multi_reduction <add>, %25, %cst_12 [1] : vector<8x8xf32> to vector<8xf32>
    %27 = vector.shape_cast %26 : vector<8xf32> to vector<8x1xf32>
    %28 = tpu.reciprocal %27 {approx = true} : vector<8x1xf32> -> vector<8x1xf32>
    %29 = arith.mulf %27, %28 : vector<8x1xf32>
    %cst_13 = arith.constant 2.000000e+00 : f32
    %30 = vector.broadcast %cst_13 : f32 to vector<8x1xf32>
    %31 = arith.subf %30, %29 : vector<8x1xf32>
    %32 = arith.mulf %28, %31 : vector<8x1xf32>
    %33 = vector.broadcast %32 : vector<8x1xf32> to vector<8x8xf32>
    %34 = arith.mulf %25, %33 : vector<8x8xf32>
    %c0_14 = arith.constant 0 : index
    %c0_15 = arith.constant 0 : index
    %35 = vector.load %arg4[%c0_14, %c0_15] : memref<32x128xf32, #tpu.memory_space<vmem>>, vector<8x128xf32>
    %cst_16 = arith.constant dense<0.000000e+00> : vector<8x128xf32>
    %36 = tpu.matmul %18, %35, %cst_16 {dimension_numbers = #tpu.dot_dimension_numbers<[1], [0], [0], [1], [0, 0, 1, 1], [], []>} : vector<8x8xf32>, vector<8x128xf32>, vector<8x128xf32> -> vector<8x128xf32>
    %cst_17 = arith.constant dense<0.000000e+00> : vector<8x128xf32>
    %37 = tpu.matmul %34, %36, %cst_17 {dimension_numbers = #tpu.dot_dimension_numbers<[1], [0], [0], [1], [0, 0, 1, 1], [], []>} : vector<8x8xf32>, vector<8x128xf32>, vector<8x128xf32> -> vector<8x128xf32>
    %38 = arith.addf %15, %37 : vector<8x128xf32>
    %39 = vector.extract_strided_slice %6 {offsets = [0, 8], sizes = [8, 8], strides = [1, 1]} : vector<8x96xf32> to vector<8x8xf32>
    %40 = vector.extract_strided_slice %6 {offsets = [0, 40], sizes = [8, 8], strides = [1, 1]} : vector<8x96xf32> to vector<8x8xf32>
    %41 = vector.extract_strided_slice %6 {offsets = [0, 72], sizes = [8, 8], strides = [1, 1]} : vector<8x96xf32> to vector<8x8xf32>
    %cst_18 = arith.constant dense<0.000000e+00> : vector<8x8xf32>
    %42 = tpu.matmul %39, %40, %cst_18 {dimension_numbers = #tpu.dot_dimension_numbers<[1], [1], [0], [0], [0, 0, 1, 0], [], []>} : vector<8x8xf32>, vector<8x8xf32>, vector<8x8xf32> -> vector<8x8xf32>
    %43 = arith.addf %42, %12 : vector<8x8xf32>
    %cst_19 = arith.constant dense<0xFF800000> : vector<8xf32>
    %44 = vector.multi_reduction <maximumf>, %43, %cst_19 [1] : vector<8x8xf32> to vector<8xf32>
    %45 = vector.shape_cast %44 : vector<8xf32> to vector<8x1xf32>
    %46 = vector.broadcast %45 : vector<8x1xf32> to vector<8x8xf32>
    %47 = arith.subf %43, %46 : vector<8x8xf32>
    %48 = math.exp %47 : vector<8x8xf32>
    %cst_20 = arith.constant dense<0.000000e+00> : vector<8xf32>
    %49 = vector.multi_reduction <add>, %48, %cst_20 [1] : vector<8x8xf32> to vector<8xf32>
    %50 = vector.shape_cast %49 : vector<8xf32> to vector<8x1xf32>
    %51 = tpu.reciprocal %50 {approx = true} : vector<8x1xf32> -> vector<8x1xf32>
    %52 = arith.mulf %50, %51 : vector<8x1xf32>
    %cst_21 = arith.constant 2.000000e+00 : f32
    %53 = vector.broadcast %cst_21 : f32 to vector<8x1xf32>
    %54 = arith.subf %53, %52 : vector<8x1xf32>
    %55 = arith.mulf %51, %54 : vector<8x1xf32>
    %56 = vector.broadcast %55 : vector<8x1xf32> to vector<8x8xf32>
    %57 = arith.mulf %48, %56 : vector<8x8xf32>
    %c8 = arith.constant 8 : index
    %c0_22 = arith.constant 0 : index
    %58 = vector.load %arg4[%c8, %c0_22] : memref<32x128xf32, #tpu.memory_space<vmem>>, vector<8x128xf32>
    %cst_23 = arith.constant dense<0.000000e+00> : vector<8x128xf32>
    %59 = tpu.matmul %41, %58, %cst_23 {dimension_numbers = #tpu.dot_dimension_numbers<[1], [0], [0], [1], [0, 0, 1, 1], [], []>} : vector<8x8xf32>, vector<8x128xf32>, vector<8x128xf32> -> vector<8x128xf32>
    %cst_24 = arith.constant dense<0.000000e+00> : vector<8x128xf32>
    %60 = tpu.matmul %57, %59, %cst_24 {dimension_numbers = #tpu.dot_dimension_numbers<[1], [0], [0], [1], [0, 0, 1, 1], [], []>} : vector<8x8xf32>, vector<8x128xf32>, vector<8x128xf32> -> vector<8x128xf32>
    %61 = arith.addf %38, %60 : vector<8x128xf32>
    %62 = vector.extract_strided_slice %6 {offsets = [0, 16], sizes = [8, 8], strides = [1, 1]} : vector<8x96xf32> to vector<8x8xf32>
    %63 = vector.extract_strided_slice %6 {offsets = [0, 48], sizes = [8, 8], strides = [1, 1]} : vector<8x96xf32> to vector<8x8xf32>
    %64 = vector.extract_strided_slice %6 {offsets = [0, 80], sizes = [8, 8], strides = [1, 1]} : vector<8x96xf32> to vector<8x8xf32>
    %cst_25 = arith.constant dense<0.000000e+00> : vector<8x8xf32>
    %65 = tpu.matmul %62, %63, %cst_25 {dimension_numbers = #tpu.dot_dimension_numbers<[1], [1], [0], [0], [0, 0, 1, 0], [], []>} : vector<8x8xf32>, vector<8x8xf32>, vector<8x8xf32> -> vector<8x8xf32>
    %66 = arith.addf %65, %12 : vector<8x8xf32>
    %cst_26 = arith.constant dense<0xFF800000> : vector<8xf32>
    %67 = vector.multi_reduction <maximumf>, %66, %cst_26 [1] : vector<8x8xf32> to vector<8xf32>
    %68 = vector.shape_cast %67 : vector<8xf32> to vector<8x1xf32>
    %69 = vector.broadcast %68 : vector<8x1xf32> to vector<8x8xf32>
    %70 = arith.subf %66, %69 : vector<8x8xf32>
    %71 = math.exp %70 : vector<8x8xf32>
    %cst_27 = arith.constant dense<0.000000e+00> : vector<8xf32>
    %72 = vector.multi_reduction <add>, %71, %cst_27 [1] : vector<8x8xf32> to vector<8xf32>
    %73 = vector.shape_cast %72 : vector<8xf32> to vector<8x1xf32>
    %74 = tpu.reciprocal %73 {approx = true} : vector<8x1xf32> -> vector<8x1xf32>
    %75 = arith.mulf %73, %74 : vector<8x1xf32>
    %cst_28 = arith.constant 2.000000e+00 : f32
    %76 = vector.broadcast %cst_28 : f32 to vector<8x1xf32>
    %77 = arith.subf %76, %75 : vector<8x1xf32>
    %78 = arith.mulf %74, %77 : vector<8x1xf32>
    %79 = vector.broadcast %78 : vector<8x1xf32> to vector<8x8xf32>
    %80 = arith.mulf %71, %79 : vector<8x8xf32>
    %c16 = arith.constant 16 : index
    %c0_29 = arith.constant 0 : index
    %81 = vector.load %arg4[%c16, %c0_29] : memref<32x128xf32, #tpu.memory_space<vmem>>, vector<8x128xf32>
    %cst_30 = arith.constant dense<0.000000e+00> : vector<8x128xf32>
    %82 = tpu.matmul %64, %81, %cst_30 {dimension_numbers = #tpu.dot_dimension_numbers<[1], [0], [0], [1], [0, 0, 1, 1], [], []>} : vector<8x8xf32>, vector<8x128xf32>, vector<8x128xf32> -> vector<8x128xf32>
    %cst_31 = arith.constant dense<0.000000e+00> : vector<8x128xf32>
    %83 = tpu.matmul %80, %82, %cst_31 {dimension_numbers = #tpu.dot_dimension_numbers<[1], [0], [0], [1], [0, 0, 1, 1], [], []>} : vector<8x8xf32>, vector<8x128xf32>, vector<8x128xf32> -> vector<8x128xf32>
    %84 = arith.addf %61, %83 : vector<8x128xf32>
    %85 = vector.extract_strided_slice %6 {offsets = [0, 24], sizes = [8, 8], strides = [1, 1]} : vector<8x96xf32> to vector<8x8xf32>
    %86 = vector.extract_strided_slice %6 {offsets = [0, 56], sizes = [8, 8], strides = [1, 1]} : vector<8x96xf32> to vector<8x8xf32>
    %87 = vector.extract_strided_slice %6 {offsets = [0, 88], sizes = [8, 8], strides = [1, 1]} : vector<8x96xf32> to vector<8x8xf32>
    %cst_32 = arith.constant dense<0.000000e+00> : vector<8x8xf32>
    %88 = tpu.matmul %85, %86, %cst_32 {dimension_numbers = #tpu.dot_dimension_numbers<[1], [1], [0], [0], [0, 0, 1, 0], [], []>} : vector<8x8xf32>, vector<8x8xf32>, vector<8x8xf32> -> vector<8x8xf32>
    %89 = arith.addf %88, %12 : vector<8x8xf32>
    %cst_33 = arith.constant dense<0xFF800000> : vector<8xf32>
    %90 = vector.multi_reduction <maximumf>, %89, %cst_33 [1] : vector<8x8xf32> to vector<8xf32>
    %91 = vector.shape_cast %90 : vector<8xf32> to vector<8x1xf32>
    %92 = vector.broadcast %91 : vector<8x1xf32> to vector<8x8xf32>
    %93 = arith.subf %89, %92 : vector<8x8xf32>
    %94 = math.exp %93 : vector<8x8xf32>
    %cst_34 = arith.constant dense<0.000000e+00> : vector<8xf32>
    %95 = vector.multi_reduction <add>, %94, %cst_34 [1] : vector<8x8xf32> to vector<8xf32>
    %96 = vector.shape_cast %95 : vector<8xf32> to vector<8x1xf32>
    %97 = tpu.reciprocal %96 {approx = true} : vector<8x1xf32> -> vector<8x1xf32>
    %98 = arith.mulf %96, %97 : vector<8x1xf32>
    %cst_35 = arith.constant 2.000000e+00 : f32
    %99 = vector.broadcast %cst_35 : f32 to vector<8x1xf32>
    %100 = arith.subf %99, %98 : vector<8x1xf32>
    %101 = arith.mulf %97, %100 : vector<8x1xf32>
    %102 = vector.broadcast %101 : vector<8x1xf32> to vector<8x8xf32>
    %103 = arith.mulf %94, %102 : vector<8x8xf32>
    %c24 = arith.constant 24 : index
    %c0_36 = arith.constant 0 : index
    %104 = vector.load %arg4[%c24, %c0_36] : memref<32x128xf32, #tpu.memory_space<vmem>>, vector<8x128xf32>
    %cst_37 = arith.constant dense<0.000000e+00> : vector<8x128xf32>
    %105 = tpu.matmul %87, %104, %cst_37 {dimension_numbers = #tpu.dot_dimension_numbers<[1], [0], [0], [1], [0, 0, 1, 1], [], []>} : vector<8x8xf32>, vector<8x128xf32>, vector<8x128xf32> -> vector<8x128xf32>
    %cst_38 = arith.constant dense<0.000000e+00> : vector<8x128xf32>
    %106 = tpu.matmul %103, %105, %cst_38 {dimension_numbers = #tpu.dot_dimension_numbers<[1], [0], [0], [1], [0, 0, 1, 1], [], []>} : vector<8x8xf32>, vector<8x128xf32>, vector<8x128xf32> -> vector<8x128xf32>
    %107 = arith.addf %84, %106 : vector<8x128xf32>
    %c0_39 = arith.constant 0 : index
    %c0_40 = arith.constant 0 : index
    %c0_41 = arith.constant 0 : index
    %108 = vector.load %arg6[%c0_39, %c0_40, %c0_41] : memref<1x8x128xf32, #tpu.memory_space<vmem>>, vector<1x8x128xf32>
    %109 = vector.shape_cast %108 : vector<1x8x128xf32> to vector<8x128xf32>
    %110 = vector.shape_cast %107 : vector<8x128xf32> to vector<1x8x128xf32>
    tpu.vector_store %arg6[%c0_39, %c0_40, %c0_41], %110 {strides = array<i32>} : memref<1x8x128xf32, #tpu.memory_space<vmem>>, vector<1x8x128xf32>,
    return
  }
  func.func @transform_0(%arg0: i32) -> (i32, i32, i32) {
    %c0_i32 = arith.constant 0 : i32
    %c0_i32_0 = arith.constant 0 : i32
    %c0_i32_1 = arith.constant 0 : i32
    return %arg0, %c0_i32, %c0_i32_0 : i32, i32, i32
  }
  func.func @transform_1(%arg0: i32) -> (i32, i32) {
    %c0_i32 = arith.constant 0 : i32
    %c0_i32_0 = arith.constant 0 : i32
    %c0_i32_1 = arith.constant 0 : i32
    return %c0_i32, %c0_i32_0 : i32, i32
  }
  func.func @transform_2(%arg0: i32) -> (i32, i32) {
    %c0_i32 = arith.constant 0 : i32
    %c0_i32_0 = arith.constant 0 : i32
    %c0_i32_1 = arith.constant 0 : i32
    return %c0_i32, %c0_i32_0 : i32, i32
  }
  func.func @transform_3(%arg0: i32) -> (i32, i32) {
    %c0_i32 = arith.constant 0 : i32
    %c0_i32_0 = arith.constant 0 : i32
    %c0_i32_1 = arith.constant 0 : i32
    return %c0_i32, %c0_i32_0 : i32, i32
  }
  func.func @transform_4(%arg0: i32) -> (i32, i32) {
    %c0_i32 = arith.constant 0 : i32
    %c0_i32_0 = arith.constant 0 : i32
    %c0_i32_1 = arith.constant 0 : i32
    return %c0_i32, %c0_i32_0 : i32, i32
  }
  func.func @transform_5(%arg0: i32) -> (i32, i32, i32) {
    %c0_i32 = arith.constant 0 : i32
    %c0_i32_0 = arith.constant 0 : i32
    %c0_i32_1 = arith.constant 0 : i32
    return %arg0, %c0_i32, %c0_i32_0 : i32, i32, i32
  }
}

</mosaic_0001>

<llo_original>
// kernel: tpu_custom_call.1
$region0: #{tpu_custom_call.1}
  #allocation0 [shape = 'u32[]', space=smem, size = 0x4, offset = 0x4, fixed_abs, tag = 'smem constant byte address 0x4 - core index']
  #allocation1 [shape = 'u32[144,128]{1,0:T(1,128)}', space=vmem, size = 0x12000, scoped, tag = 'internal scratch']
  %s0 = inlined_call_operand.hbm [shape: f32[2,8,32], index: 0, kind: input, shape index: {}]
  %s1 = inlined_call_operand.hbm [shape: f32[32,96], index: 1, kind: input, shape index: {}]
  %s2 = inlined_call_operand.vmem [shape: f32[1,96], index: 2, kind: input, shape index: {}]
  %s3 = inlined_call_operand.hbm [shape: f32[32,128], index: 3, kind: input, shape index: {}]
  %s4 = inlined_call_operand.vmem [shape: f32[1,128], index: 4, kind: input, shape index: {}]
  %s5 = inlined_call_operand.hbm [shape: f32[2,8,128], index: 5, kind: output, shape index: {}]
  %s6 = sld [smem:[#allocation0]]
  $region65: #{tpu_custom_call.1} parent=0
    _
  %s8 = ssub.s32 1, %s6
  %s9 = scalar_select 0, %s8, %s6
  $region1: #{tpu_custom_call.1} parent=0
    #allocation2 [shape = 'u8[8192]{0}', space=vmem, size = 0x2000, scoped, tag = 'input window, operand 0']
    #allocation3 [shape = 's32[2]{0}', space=sflag, size = 0x8, scoped, tag = 'scoped memory for tpu_custom_call.1']
    #allocation4 [shape = 's32[2]{0}', space=sflag, size = 0x8, scoped, tag = 'scoped memory for tpu_custom_call.1']
    #allocation5 [shape = 'u8[16384]{0}', space=vmem, size = 0x4000, scoped, tag = 'input window, operand 1, single buffered']
    #allocation6 [shape = 's32[1]{0}', space=sflag, size = 0x4, scoped, tag = 'scoped memory for tpu_custom_call.1']
    #allocation7 [shape = 'u8[16384]{0}', space=vmem, size = 0x4000, scoped, tag = 'input window, operand 3, single buffered']
    #allocation8 [shape = 'u8[8192]{0}', space=vmem, size = 0x2000, scoped, tag = 'output window, operand 0']
    %10 = vsyncpa [#allocation3], 0
    %s11 = scalar_lea.sflag [#allocation3], 1
    %12 = vsyncpa %s11, 0
    %13 = vsyncpa [#allocation6], 0
    %14 = vsyncpa [#allocation4], 0
    %s15 = scalar_lea.sflag [#allocation4], 1
    %16 = vsyncpa %s15, 0
    loop: start=0, step=1, limit=4
    $region2: #{tpu_custom_call.1} parent=1 // loop_pre_header
      _
    $region3: #{tpu_custom_call.1} parent=1 // loop_header
      %s18 = sphi 0, %s22
      %p19 = scmp.ge.s32.totalorder %s18, 4
      %s28 = sphi 0, %s30
      %s31 = sphi 0, %s28
      %s32 = sphi 0, %s31
      %s48 = sphi 0, %s32
      %s52 = sphi 0, %s52
      %s54 = sphi 0, %s52
      %s55 = sphi 0, %s54
      %s69 = sphi 0, %s55
      %s73 = sphi 0, %s73
      %s75 = sphi 0, %s73
      %s76 = sphi 0, %s75
      %s90 = sphi 0, %s76
      %s94 = sphi 0, %s94
      %s96 = sphi 0, %s94
      %s97 = sphi 0, %s96
      %s111 = sphi 0, %s97
      %s115 = sphi 0, %s115
      %s117 = sphi 0, %s115
      %s118 = sphi 0, %s117
      %s132 = sphi 0, %s118
      %s138 = sphi 0, %s140
      %s141 = sphi 0, %s138
      %s142 = sphi 0, %s141
      %s158 = sphi 0, %s142
    $region4: #{tpu_custom_call.1} parent=1 // loop_header_branch
      %21 = sbr.rel (%p19) target = $region8
    $region5: #{tpu_custom_call.1} parent=1 // loop_body
      %s23 = ssub.s32 %s18, 1
      %s24 = ssub.s32 %s18, 2
      %s25 = sadd.s32 %s18, 1
      %s26 = ssub.s32 %s18, %s25
      %p27 = scmp.eq.s32.totalorder %s26, 0
      %s29 = sadd.s32 %s28, 1
      %s30 = scalar_select %p27, %s28, %s29
      %p33 = pneg %p27
      %p34 = scmp.eq.s32.totalorder %s18, 1
      %p35 = por %p33, %p34
      %p36 = scmp.ne.s32.totalorder %s28, %s31
      %p37 = scmp.eq.s32.totalorder %s18, 0
      %p38 = por %p36, %p37
      %p39 = scmp.ne.s32.totalorder %s28, %s31
      %p40 = scmp.eq.s32.totalorder %s23, 1
      %p41 = por %p39, %p40
      %p42 = scmp.ne.s32.totalorder %s31, %s32
      %p43 = scmp.eq.s32.totalorder %s23, 0
      %p44 = por %p42, %p43
      %p45 = scmp.ne.s32.totalorder %s31, %s32
      %p46 = scmp.eq.s32.totalorder %s24, 1
      %p47 = por %p45, %p46
      %p49 = scmp.ne.s32.totalorder %s32, %s48
      %p50 = scmp.eq.s32.totalorder %s24, 0
      %p51 = por %p49, %p50
      %s53 = sadd.s32 %s52, 1
      %p56 = scmp.eq.s32.totalorder %s18, 1
      %p57 = scmp.ne.s32.totalorder %s52, %s54
      %p58 = scmp.eq.s32.totalorder %s18, 0
      %p59 = por %p57, %p58
      %p60 = scmp.ne.s32.totalorder %s52, %s54
      %p61 = scmp.eq.s32.totalorder %s23, 1
      %p62 = por %p60, %p61
      %p63 = scmp.ne.s32.totalorder %s54, %s55
      %p64 = scmp.eq.s32.totalorder %s23, 0
      %p65 = por %p63, %p64
      %p66 = scmp.ne.s32.totalorder %s54, %s55
      %p67 = scmp.eq.s32.totalorder %s24, 1
      %p68 = por %p66, %p67
      %p70 = scmp.ne.s32.totalorder %s55, %s69
      %p71 = scmp.eq.s32.totalorder %s24, 0
      %p72 = por %p70, %p71
      %s74 = sadd.s32 %s73, 1
      %p77 = scmp.eq.s32.totalorder %s18, 1
      %p78 = scmp.ne.s32.totalorder %s73, %s75
      %p79 = scmp.eq.s32.totalorder %s18, 0
      %p80 = por %p78, %p79
      %p81 = scmp.ne.s32.totalorder %s73, %s75
      %p82 = scmp.eq.s32.totalorder %s23, 1
      %p83 = por %p81, %p82
      %p84 = scmp.ne.s32.totalorder %s75, %s76
      %p85 = scmp.eq.s32.totalorder %s23, 0
      %p86 = por %p84, %p85
      %p87 = scmp.ne.s32.totalorder %s75, %s76
      %p88 = scmp.eq.s32.totalorder %s24, 1
      %p89 = por %p87, %p88
      %p91 = scmp.ne.s32.totalorder %s76, %s90
      %p92 = scmp.eq.s32.totalorder %s24, 0
      %p93 = por %p91, %p92
      %s95 = sadd.s32 %s94, 1
      %p98 = scmp.eq.s32.totalorder %s18, 1
      %p99 = scmp.ne.s32.totalorder %s94, %s96
      %p100 = scmp.eq.s32.totalorder %s18, 0
      %p101 = por %p99, %p100
      %p102 = scmp.ne.s32.totalorder %s94, %s96
      %p103 = scmp.eq.s32.totalorder %s23, 1
      %p104 = por %p102, %p103
      %p105 = scmp.ne.s32.totalorder %s96, %s97
      %p106 = scmp.eq.s32.totalorder %s23, 0
      %p107 = por %p105, %p106
      %p108 = scmp.ne.s32.totalorder %s96, %s97
      %p109 = scmp.eq.s32.totalorder %s24, 1
      %p110 = por %p108, %p109
      %p112 = scmp.ne.s32.totalorder %s97, %s111
      %p113 = scmp.eq.s32.totalorder %s24, 0
      %p114 = por %p112, %p113
      %s116 = sadd.s32 %s115, 1
      %p119 = scmp.eq.s32.totalorder %s18, 1
      %p120 = scmp.ne.s32.totalorder %s115, %s117
      %p121 = scmp.eq.s32.totalorder %s18, 0
      %p122 = por %p120, %p121
      %p123 = scmp.ne.s32.totalorder %s115, %s117
      %p124 = scmp.eq.s32.totalorder %s23, 1
      %p125 = por %p123, %p124
      %p126 = scmp.ne.s32.totalorder %s117, %s118
      %p127 = scmp.eq.s32.totalorder %s23, 0
      %p128 = por %p126, %p127
      %p129 = scmp.ne.s32.totalorder %s117, %s118
      %p130 = scmp.eq.s32.totalorder %s24, 1
      %p131 = por %p129, %p130
      %p133 = scmp.ne.s32.totalorder %s118, %s132
      %p134 = scmp.eq.s32.totalorder %s24, 0
      %p135 = por %p133, %p134
      %s136 = ssub.s32 %s18, %s25
      %p137 = scmp.eq.s32.totalorder %s136, 0
      %s139 = sadd.s32 %s138, 1
      %s140 = scalar_select %p137, %s138, %s139
      %p143 = pneg %p137
      %p144 = scmp.eq.s32.totalorder %s18, 1
      %p145 = por %p143, %p144
      %p146 = scmp.ne.s32.totalorder %s138, %s141
      %p147 = scmp.eq.s32.totalorder %s18, 0
      %p148 = por %p146, %p147
      %p149 = scmp.ne.s32.totalorder %s138, %s141
      %p150 = scmp.eq.s32.totalorder %s23, 1
      %p151 = por %p149, %p150
      %p152 = scmp.ne.s32.totalorder %s141, %s142
      %p153 = scmp.eq.s32.totalorder %s23, 0
      %p154 = por %p152, %p153
      %p155 = scmp.ne.s32.totalorder %s141, %s142
      %p156 = scmp.eq.s32.totalorder %s24, 1
      %p157 = por %p155, %p156
      %p159 = scmp.ne.s32.totalorder %s142, %s158
      %p160 = scmp.eq.s32.totalorder %s24, 0
      %p161 = por %p159, %p160
      %p162 = scmp.le.s32.totalorder 1, %s18
      %p163 = scmp.lt.s32.totalorder %s18, 3
      %p164 = pnand %p162, %p163
      %p165 = pneg %p164
      // Predicated region
      $region9: #{tpu_custom_call.1} parent=5 // pred_check
        _
      $region10: #{tpu_custom_call.1} parent=5 // pred_check_branch
        %167 = sbr.rel (%p164) target = $region12
      $region11: #{tpu_custom_call.1} parent=5 // pred_region
        %s168 = ssub.s32 %s18, 1
        // Predicated region
        $region13: #{tpu_custom_call.1} parent=11 // pred_check
          %p169 = pneg %p65
        $region14: #{tpu_custom_call.1} parent=11 // pred_check_branch
          %171 = sbr.rel (%p169) target = $region16
        $region15: #{tpu_custom_call.1} parent=11 // pred_region
          %s173 = ssub.s32 512, 512
          %174 = vsyncadd [#allocation6], %s173
          %s175 = sshll.u32 [#allocation5], 4
          %s176 = int_to_ptr.vmem [resolvable:$true] %s175
          %181 = dma.hbm_to_vmem [thread:$0]  %s1, 512, %s176, [#allocation6], 128, 128, 8
        $region16: #{tpu_custom_call.1} parent=11 // pred_fallthru
          _
        // Predicated region
        $region17: #{tpu_custom_call.1} parent=11 // pred_check
          %p182 = pneg %p86
        $region18: #{tpu_custom_call.1} parent=11 // pred_check_branch
          %184 = sbr.rel (%p182) target = $region20
        $region19: #{tpu_custom_call.1} parent=11 // pred_region
          _
        $region20: #{tpu_custom_call.1} parent=11 // pred_fallthru
          _
        // Predicated region
        $region21: #{tpu_custom_call.1} parent=11 // pred_check
          %p185 = pneg %p107
        $region22: #{tpu_custom_call.1} parent=11 // pred_check_branch
          %187 = sbr.rel (%p185) target = $region24
        $region23: #{tpu_custom_call.1} parent=11 // pred_region
          %s189 = ssub.s32 512, 512
          %190 = vsyncadd [#allocation6], %s189
          %s191 = sshll.u32 [#allocation7], 4
          %s192 = int_to_ptr.vmem [resolvable:$true] %s191
          %197 = dma.hbm_to_vmem [thread:$0]  %s3, 512, %s192, [#allocation6], 128, 128, 8
        $region24: #{tpu_custom_call.1} parent=11 // pred_fallthru
          _
        // Predicated region
        $region25: #{tpu_custom_call.1} parent=11 // pred_check
          %p198 = pneg %p128
        $region26: #{tpu_custom_call.1} parent=11 // pred_check_branch
          %200 = sbr.rel (%p198) target = $region28
        $region27: #{tpu_custom_call.1} parent=11 // pred_region
          _
        $region28: #{tpu_custom_call.1} parent=11 // pred_fallthru
          _
      $region12: #{tpu_custom_call.1} parent=5 // pred_fallthru
        _
      %p201 = scmp.lt.s32.totalorder %s18, 2
      // Predicated region
      $region29: #{tpu_custom_call.1} parent=5 // pred_check
        %p202 = pneg %p201
      $region30: #{tpu_custom_call.1} parent=5 // pred_check_branch
        %204 = sbr.rel (%p202) target = $region32
      $region31: #{tpu_custom_call.1} parent=5 // pred_region
        // Predicated region
        $region33: #{tpu_custom_call.1} parent=31 // pred_check
          %p205 = pneg %p38
        $region34: #{tpu_custom_call.1} parent=31 // pred_check_branch
          %207 = sbr.rel (%p205) target = $region36
        $region35: #{tpu_custom_call.1} parent=31 // pred_region
          %s208 = sand.u32 %s28, 1
          %s209 = scalar_lea.sflag [#allocation3], %s208
          %s210 = sand.u32 %s28, 1
          %s211 = smul.addr %s210, 8
          %s212 = scalar_lea.vmem [#allocation2], %s211
          %s214 = ssub.s32 128, 128
          %215 = vsyncadd %s209, %s214
          %s216 = smul.addr %s18, 128
          %s217 = scalar_lea.hbm %s0, %s216
          %s219 = sshll.u32 %s212, 4
          %s220 = int_to_ptr.vmem [resolvable:$true] %s219
          %222 = dma.hbm_to_vmem [thread:$0]  %s217, 128, %s220, %s209
        $region36: #{tpu_custom_call.1} parent=31 // pred_fallthru
          _
      $region32: #{tpu_custom_call.1} parent=5 // pred_fallthru
        _
      %p223 = scmp.le.s32.totalorder 1, %s18
      %p224 = scmp.lt.s32.totalorder %s18, 3
      %p225 = pnand %p223, %p224
      %p226 = pneg %p225
      // Predicated region
      $region37: #{tpu_custom_call.1} parent=5 // pred_check
        _
      $region38: #{tpu_custom_call.1} parent=5 // pred_check_branch
        %228 = sbr.rel (%p225) target = $region40
      $region39: #{tpu_custom_call.1} parent=5 // pred_region
        %s229 = ssub.s32 %s18, 1
        %s230 = sand.u32 %s31, 1
        %s231 = scalar_lea.sflag [#allocation3], %s230
        %s232 = sand.u32 %s31, 1
        %s233 = smul.addr %s232, 8
        %s234 = scalar_lea.vmem [#allocation2], %s233
        // Predicated region
        $region41: #{tpu_custom_call.1} parent=39 // pred_check
          %p235 = pneg %p44
        $region42: #{tpu_custom_call.1} parent=39 // pred_check_branch
          %237 = sbr.rel (%p235) target = $region44
        $region43: #{tpu_custom_call.1} parent=39 // pred_region
          %238 = dma.done %s231, 128
        $region44: #{tpu_custom_call.1} parent=39 // pred_fallthru
          _
        // Predicated region
        $region45: #{tpu_custom_call.1} parent=39 // pred_check
          %p239 = pneg %p65
        $region46: #{tpu_custom_call.1} parent=39 // pred_check_branch
          %241 = sbr.rel (%p239) target = $region48
        $region47: #{tpu_custom_call.1} parent=39 // pred_region
          %242 = dma.done [#allocation6], 512
        $region48: #{tpu_custom_call.1} parent=39 // pred_fallthru
          _
        // Predicated region
        $region49: #{tpu_custom_call.1} parent=39 // pred_check
          %p243 = pneg %p107
        $region50: #{tpu_custom_call.1} parent=39 // pred_check_branch
          %245 = sbr.rel (%p243) target = $region52
        $region51: #{tpu_custom_call.1} parent=39 // pred_region
          %246 = dma.done [#allocation6], 512
        $region52: #{tpu_custom_call.1} parent=39 // pred_fallthru
          _
        %s247 = sand.u32 %s31, 1
        %s248 = scalar_lea.sflag [#allocation3], %s247
        %s249 = sand.u32 %s31, 1
        %s250 = smul.addr %s249, 8
        %s251 = scalar_lea.vmem [#allocation2], %s250
        %p252 = pneg %p44
        %p253 = pneg %p41
        %p254 = pneg %p65
        %p255 = pneg %p62
        %p256 = pneg %p86
        %p257 = pneg %p83
        %p258 = pneg %p107
        %p259 = pneg %p104
        %p260 = pneg %p128
        %p261 = pneg %p125
        %p262 = pneg %p154
        %p263 = pneg %p151
        %s264 = sand.u32 %s141, 1
        %s265 = scalar_lea.sflag [#allocation4], %s264
        %s266 = sand.u32 %s141, 1
        %s267 = smul.addr %s266, 8
        %s268 = scalar_lea.vmem [#allocation8], %s267
        %v269 = vld [vmem:[%s234] sm:$0xff]
        %v270 = vld [vmem:[#allocation5] sm:$0xff]
        %v271 = vld [vmem:[#allocation5 + $0x8] sm:$0xff]
        %v272 = vld [vmem:[#allocation5 + $0x10] sm:$0xff]
        %v273 = vld [vmem:[#allocation5 + $0x18] sm:$0xff]
        %v274 = vld [vmem:[%s2] sm:$0x1]
        %v276 = vlaneseq
        %v277 = vshrl.u32 %v276, 7
        %v278 = vsub.s32 0, %v277
        %v279 = vrot.slane %v274, %v278
        %vm281 = vcmask 261120
        %v283 = vsel %vm281, %v269, 0
        %285 = vmatprep.subr.mxu0 0.0
        %286 = vmatpush1.msra.mxu0 %v270
        %287 = vmatprep.subr.mxu0 0.0
        %288 = vmatpush1.msra.mxu0 %v271
        %289 = vmatprep.subr.mxu0 0.0
        %290 = vmatpush1.msra.mxu0 %v272
        %291 = vmatprep.subr.mxu0 0.0
        %292 = vmatpush1.msra.mxu0 %v273
        %293 = vmatprep.subr.mxu0 0.0
        %294 = vmatpush1.msra.mxu0 0.0
        %295 = vmatprep.subr.mxu0 0.0
        %296 = vmatpush1.msra.mxu0 0.0
        %297 = vmatprep.subr.mxu0 0.0
        %298 = vmatpush1.msra.mxu0 0.0
        %299 = vmatprep.subr.mxu0 0.0
        %300 = vmatpush1.msra.mxu0 0.0
        %301 = vmatprep.subr.mxu0 0.0
        %302 = vmatpush1.msra.mxu0 0.0
        %303 = vmatprep.subr.mxu0 0.0
        %304 = vmatpush1.msra.mxu0 0.0
        %305 = vmatprep.subr.mxu0 0.0
        %306 = vmatpush1.msra.mxu0 0.0
        %307 = vmatprep.subr.mxu0 0.0
        %308 = vmatpush1.msra.mxu0 0.0
        %309 = vmatprep.subr.mxu0 0.0
        %310 = vmatpush1.msra.mxu0 0.0
        %311 = vmatprep.subr.mxu0 0.0
        %312 = vmatpush1.msra.mxu0 0.0
        %313 = vmatprep.subr.mxu0 0.0
        %314 = vmatpush1.msra.mxu0 0.0
        %315 = vmatprep.subr.mxu0 0.0
        %316 = vmatpush1.msra.mxu0 0.0
        %317 = vmatprep.subr.mxu0 0.0
        %318 = vmatpush1.msra.mxu0 0.0
        %319 = vmatprep.subr.mxu0 0.0
        %320 = vmatpush1.msra.mxu0 0.0
        %321 = vmatprep.subr.mxu0 0.0
        %322 = vmatpush1.msra.mxu0 0.0
        %323 = vmatprep.subr.mxu0 0.0
        %324 = vmatpush1.msra.mxu0 0.0
        %325 = vmatprep.subr.mxu0 0.0
        %326 = vmatpush1.msra.mxu0 0.0
        %327 = vmatprep.subr.mxu0 0.0
        %328 = vmatpush1.msra.mxu0 0.0
        %329 = vmatprep.subr.mxu0 0.0
        %330 = vmatpush1.msra.mxu0 0.0
        %331 = vmatprep.subr.mxu0 0.0
        %332 = vmatpush1.msra.mxu0 0.0
        %333 = vmatprep.subr.mxu0 0.0
        %334 = vmatpush1.msra.mxu0 0.0
        %335 = vmatprep.subr.mxu0 0.0
        %336 = vmatpush1.msra.mxu0 0.0
        %337 = vmatprep.subr.mxu0 0.0
        %338 = vmatpush1.msra.mxu0 0.0
        %339 = vmatprep.subr.mxu0 0.0
        %340 = vmatpush1.msra.mxu0 0.0
        %341 = vmatprep.subr.mxu0 0.0
        %342 = vmatpush1.msra.mxu0 0.0
        %343 = vmatprep.subr.mxu0 0.0
        %344 = vmatpush1.msra.mxu0 0.0
        %345 = vmatprep.subr.mxu0 0.0
        %346 = vmatpush1.msra.mxu0 0.0
        %347 = vmatprep.subr.mxu0 0.0
        %348 = vmatpush1.msra.mxu0 0.0
        %349 = vmatprep.mubr.f32.mxu0 0.0
        %350 = vmatmul.mubr.f32.gmra.mrb[0].mxu0 %v283
        %v351 = vpop.f32.mrb[0].mxu0
        %v352 = vadd.f32 %v279, %v351
        %v353 = vpop.f32.mrb[0].mxu0
        %354 = vdwg.mxu0
        %v355 = vlaneseq
        %v356 = vshrl.u32 %v355, 7
        %v357 = vlaneseq
        %v358 = vand.u32 %v357, 127
        %vm359 = vcmp.ge.s32.totalorder %v356, %v358
        %v360 = vsel %vm359, 0.0, -1e+30
        %v361 = vld [vmem:[%s4] sm:$0x1]
        %v363 = vlaneseq
        %v364 = vshrl.u32 %v363, 7
        %v365 = vsub.s32 0, %v364
        %v366 = vrot.slane %v361, %v365
        %369 = vrot.lane.b32.xlu0 %v352, 96
        %v370 = vpop.permute.xlu0 %369
        %vm371 = vcmask 64512
        %v372 = vsel %vm371, %v352, 0
        %v374 = vsel %vm371, %v370, 0
        %376 = vmatprep.subr.mxu0 0.0
        %377 = vmatpush1.xpose.msra.mxu0 %v374
        %378 = vmatprep.subr.mxu0 0.0
        %379 = vmatpush1.xpose.msra.mxu0 0.0
        %380 = vmatprep.subr.mxu0 0.0
        %381 = vmatpush1.xpose.msra.mxu0 0.0
        %382 = vmatprep.subr.mxu0 0.0
        %383 = vmatpush1.xpose.msra.mxu0 0.0
        %384 = vmatprep.subr.mxu0 0.0
        %385 = vmatpush1.xpose.msra.mxu0 0.0
        %386 = vmatprep.subr.mxu0 0.0
        %387 = vmatpush1.xpose.msra.mxu0 0.0
        %388 = vmatprep.subr.mxu0 0.0
        %389 = vmatpush1.xpose.msra.mxu0 0.0
        %390 = vmatprep.subr.mxu0 0.0
        %391 = vmatpush1.xpose.msra.mxu0 0.0
        %392 = vmatprep.subr.mxu0 0.0
        %393 = vmatpush1.xpose.msra.mxu0 0.0
        %394 = vmatprep.subr.mxu0 0.0
        %395 = vmatpush1.xpose.msra.mxu0 0.0
        %396 = vmatprep.subr.mxu0 0.0
        %397 = vmatpush1.xpose.msra.mxu0 0.0
        %398 = vmatprep.subr.mxu0 0.0
        %399 = vmatpush1.xpose.msra.mxu0 0.0
        %400 = vmatprep.subr.mxu0 0.0
        %401 = vmatpush1.xpose.msra.mxu0 0.0
        %402 = vmatprep.subr.mxu0 0.0
        %403 = vmatpush1.xpose.msra.mxu0 0.0
        %404 = vmatprep.subr.mxu0 0.0
        %405 = vmatpush1.xpose.msra.mxu0 0.0
        %406 = vmatprep.subr.mxu0 0.0
        %407 = vmatpush1.xpose.msra.mxu0 0.0
        %408 = vmatprep.subr.mxu0 0.0
        %409 = vmatpush1.xpose.msra.mxu0 0.0
        %410 = vmatprep.subr.mxu0 0.0
        %411 = vmatpush1.xpose.msra.mxu0 0.0
        %412 = vmatprep.subr.mxu0 0.0
        %413 = vmatpush1.xpose.msra.mxu0 0.0
        %414 = vmatprep.subr.mxu0 0.0
        %415 = vmatpush1.xpose.msra.mxu0 0.0
        %416 = vmatprep.subr.mxu0 0.0
        %417 = vmatpush1.xpose.msra.mxu0 0.0
        %418 = vmatprep.subr.mxu0 0.0
        %419 = vmatpush1.xpose.msra.mxu0 0.0
        %420 = vmatprep.subr.mxu0 0.0
        %421 = vmatpush1.xpose.msra.mxu0 0.0
        %422 = vmatprep.subr.mxu0 0.0
        %423 = vmatpush1.xpose.msra.mxu0 0.0
        %424 = vmatprep.subr.mxu0 0.0
        %425 = vmatpush1.xpose.msra.mxu0 0.0
        %426 = vmatprep.subr.mxu0 0.0
        %427 = vmatpush1.xpose.msra.mxu0 0.0
        %428 = vmatprep.subr.mxu0 0.0
        %429 = vmatpush1.xpose.msra.mxu0 0.0
        %430 = vmatprep.subr.mxu0 0.0
        %431 = vmatpush1.xpose.msra.mxu0 0.0
        %432 = vmatprep.subr.mxu0 0.0
        %433 = vmatpush1.xpose.msra.mxu0 0.0
        %434 = vmatprep.subr.mxu0 0.0
        %435 = vmatpush1.xpose.msra.mxu0 0.0
        %436 = vmatprep.subr.mxu0 0.0
        %437 = vmatpush1.xpose.msra.mxu0 0.0
        %438 = vmatprep.subr.mxu0 0.0
        %439 = vmatpush1.xpose.msra.mxu0 0.0
        %440 = vmatprep.mubr.f32.mxu0 0.0
        %441 = vmatmul.mubr.f32.gmra.mrb[0].mxu0 %v372
        %v442 = vpop.f32.mrb[0].mxu0
        %v443 = vadd.f32 %v360, %v442
        %v444 = vpop.f32.mrb[0].mxu0
        %445 = vdwg.mxu0
        %v446 = vsel %vm371, %v443, -inf
        %447 = vmax.xlane.f32.xlu0 %v446
        %v448 = vpop.xlane.xlu0 %447
        %v449 = vsub.f32 %v443, %v448
        %v450 = vmul.f32 %v449, 1.442695
        %v451 = vpow.pop %v450
        %v452 = vsel %vm371, %v451, 0.0
        %453 = vadd.xlane.f32.xlu0 %v452
        %v454 = vpop.xlane.xlu0 %453
        %v455 = vrcp.pop %v454
        %v456 = vmul.f32 %v454, %v455
        %v457 = vsub.f32 2.0, %v456
        %v458 = vmul.f32 %v455, %v457
        %v459 = vmul.f32 %v451, %v458
        %v460 = vld [vmem:[#allocation7] sm:$0xff]
        %461 = vrot.lane.b32.xlu0 %v352, 64
        %v462 = vpop.permute.xlu0 %461
        %v463 = vsel %vm371, %v462, 0
        %465 = vmatprep.subr.mxu0 0.0
        %466 = vmatpush1.msra.mxu0 %v460
        %467 = vmatprep.subr.mxu0 0.0
        %468 = vmatpush1.msra.mxu0 0.0
        %469 = vmatprep.subr.mxu0 0.0
        %470 = vmatpush1.msra.mxu0 0.0
        %471 = vmatprep.subr.mxu0 0.0
        %472 = vmatpush1.msra.mxu0 0.0
        %473 = vmatprep.subr.mxu0 0.0
        %474 = vmatpush1.msra.mxu0 0.0
        %475 = vmatprep.subr.mxu0 0.0
        %476 = vmatpush1.msra.mxu0 0.0
        %477 = vmatprep.subr.mxu0 0.0
        %478 = vmatpush1.msra.mxu0 0.0
        %479 = vmatprep.subr.mxu0 0.0
        %480 = vmatpush1.msra.mxu0 0.0
        %481 = vmatprep.subr.mxu0 0.0
        %482 = vmatpush1.msra.mxu0 0.0
        %483 = vmatprep.subr.mxu0 0.0
        %484 = vmatpush1.msra.mxu0 0.0
        %485 = vmatprep.subr.mxu0 0.0
        %486 = vmatpush1.msra.mxu0 0.0
        %487 = vmatprep.subr.mxu0 0.0
        %488 = vmatpush1.msra.mxu0 0.0
        %489 = vmatprep.subr.mxu0 0.0
        %490 = vmatpush1.msra.mxu0 0.0
        %491 = vmatprep.subr.mxu0 0.0
        %492 = vmatpush1.msra.mxu0 0.0
        %493 = vmatprep.subr.mxu0 0.0
        %494 = vmatpush1.msra.mxu0 0.0
        %495 = vmatprep.subr.mxu0 0.0
        %496 = vmatpush1.msra.mxu0 0.0
        %497 = vmatprep.subr.mxu0 0.0
        %498 = vmatpush1.msra.mxu0 0.0
        %499 = vmatprep.subr.mxu0 0.0
        %500 = vmatpush1.msra.mxu0 0.0
        %501 = vmatprep.subr.mxu0 0.0
        %502 = vmatpush1.msra.mxu0 0.0
        %503 = vmatprep.subr.mxu0 0.0
        %504 = vmatpush1.msra.mxu0 0.0
        %505 = vmatprep.subr.mxu0 0.0
        %506 = vmatpush1.msra.mxu0 0.0
        %507 = vmatprep.subr.mxu0 0.0
        %508 = vmatpush1.msra.mxu0 0.0
        %509 = vmatprep.subr.mxu0 0.0
        %510 = vmatpush1.msra.mxu0 0.0
        %511 = vmatprep.subr.mxu0 0.0
        %512 = vmatpush1.msra.mxu0 0.0
        %513 = vmatprep.subr.mxu0 0.0
        %514 = vmatpush1.msra.mxu0 0.0
        %515 = vmatprep.subr.mxu0 0.0
        %516 = vmatpush1.msra.mxu0 0.0
        %517 = vmatprep.subr.mxu0 0.0
        %518 = vmatpush1.msra.mxu0 0.0
        %519 = vmatprep.subr.mxu0 0.0
        %520 = vmatpush1.msra.mxu0 0.0
        %521 = vmatprep.subr.mxu0 0.0
        %522 = vmatpush1.msra.mxu0 0.0
        %523 = vmatprep.subr.mxu0 0.0
        %524 = vmatpush1.msra.mxu0 0.0
        %525 = vmatprep.subr.mxu0 0.0
        %526 = vmatpush1.msra.mxu0 0.0
        %527 = vmatprep.subr.mxu0 0.0
        %528 = vmatpush1.msra.mxu0 0.0
        %529 = vmatprep.mubr.f32.mxu0 0.0
        %530 = vmatmul.mubr.f32.gmra.mrb[0].mxu0 %v463
        %v531 = vpop.f32.mrb[0].mxu0
        %v532 = vadd.f32 0.0, %v531
        %v533 = vpop.f32.mrb[0].mxu0
        %534 = vdwg.mxu0
        %v536 = vsel %vm371, %v459, 0
        %538 = vmatprep.subr.mxu0 0.0
        %539 = vmatpush1.msra.mxu0 %v532
        %540 = vmatprep.subr.mxu0 0.0
        %541 = vmatpush1.msra.mxu0 0.0
        %542 = vmatprep.subr.mxu0 0.0
        %543 = vmatpush1.msra.mxu0 0.0
        %544 = vmatprep.subr.mxu0 0.0
        %545 = vmatpush1.msra.mxu0 0.0
        %546 = vmatprep.subr.mxu0 0.0
        %547 = vmatpush1.msra.mxu0 0.0
        %548 = vmatprep.subr.mxu0 0.0
        %549 = vmatpush1.msra.mxu0 0.0
        %550 = vmatprep.subr.mxu0 0.0
        %551 = vmatpush1.msra.mxu0 0.0
        %552 = vmatprep.subr.mxu0 0.0
        %553 = vmatpush1.msra.mxu0 0.0
        %554 = vmatprep.subr.mxu0 0.0
        %555 = vmatpush1.msra.mxu0 0.0
        %556 = vmatprep.subr.mxu0 0.0
        %557 = vmatpush1.msra.mxu0 0.0
        %558 = vmatprep.subr.mxu0 0.0
        %559 = vmatpush1.msra.mxu0 0.0
        %560 = vmatprep.subr.mxu0 0.0
        %561 = vmatpush1.msra.mxu0 0.0
        %562 = vmatprep.subr.mxu0 0.0
        %563 = vmatpush1.msra.mxu0 0.0
        %564 = vmatprep.subr.mxu0 0.0
        %565 = vmatpush1.msra.mxu0 0.0
        %566 = vmatprep.subr.mxu0 0.0
        %567 = vmatpush1.msra.mxu0 0.0
        %568 = vmatprep.subr.mxu0 0.0
        %569 = vmatpush1.msra.mxu0 0.0
        %570 = vmatprep.subr.mxu0 0.0
        %571 = vmatpush1.msra.mxu0 0.0
        %572 = vmatprep.subr.mxu0 0.0
        %573 = vmatpush1.msra.mxu0 0.0
        %574 = vmatprep.subr.mxu0 0.0
        %575 = vmatpush1.msra.mxu0 0.0
        %576 = vmatprep.subr.mxu0 0.0
        %577 = vmatpush1.msra.mxu0 0.0
        %578 = vmatprep.subr.mxu0 0.0
        %579 = vmatpush1.msra.mxu0 0.0
        %580 = vmatprep.subr.mxu0 0.0
        %581 = vmatpush1.msra.mxu0 0.0
        %582 = vmatprep.subr.mxu0 0.0
        %583 = vmatpush1.msra.mxu0 0.0
        %584 = vmatprep.subr.mxu0 0.0
        %585 = vmatpush1.msra.mxu0 0.0
        %586 = vmatprep.subr.mxu0 0.0
        %587 = vmatpush1.msra.mxu0 0.0
        %588 = vmatprep.subr.mxu0 0.0
        %589 = vmatpush1.msra.mxu0 0.0
        %590 = vmatprep.subr.mxu0 0.0
        %591 = vmatpush1.msra.mxu0 0.0
        %592 = vmatprep.subr.mxu0 0.0
        %593 = vmatpush1.msra.mxu0 0.0
        %594 = vmatprep.subr.mxu0 0.0
        %595 = vmatpush1.msra.mxu0 0.0
        %596 = vmatprep.subr.mxu0 0.0
        %597 = vmatpush1.msra.mxu0 0.0
        %598 = vmatprep.subr.mxu0 0.0
        %599 = vmatpush1.msra.mxu0 0.0
        %600 = vmatprep.subr.mxu0 0.0
        %601 = vmatpush1.msra.mxu0 0.0
        %602 = vmatprep.mubr.f32.mxu0 0.0
        %603 = vmatmul.mubr.f32.gmra.mrb[0].mxu0 %v536
        %v604 = vpop.f32.mrb[0].mxu0
        %v605 = vadd.f32 0.0, %v604
        %v606 = vpop.f32.mrb[0].mxu0
        %607 = vdwg.mxu0
        %v608 = vadd.f32 %v366, %v605
        %609 = vrot.lane.b32.xlu0 %v352, 120
        %v610 = vpop.permute.xlu0 %609
        %611 = vrot.lane.b32.xlu0 %v352, 88
        %v612 = vpop.permute.xlu0 %611
        %v613 = vsel %vm371, %v610, 0
        %v615 = vsel %vm371, %v612, 0
        %617 = vmatprep.subr.mxu0 0.0
        %618 = vmatpush1.xpose.msra.mxu0 %v615
        %619 = vmatprep.subr.mxu0 0.0
        %620 = vmatpush1.xpose.msra.mxu0 0.0
        %621 = vmatprep.subr.mxu0 0.0
        %622 = vmatpush1.xpose.msra.mxu0 0.0
        %623 = vmatprep.subr.mxu0 0.0
        %624 = vmatpush1.xpose.msra.mxu0 0.0
        %625 = vmatprep.subr.mxu0 0.0
        %626 = vmatpush1.xpose.msra.mxu0 0.0
        %627 = vmatprep.subr.mxu0 0.0
        %628 = vmatpush1.xpose.msra.mxu0 0.0
        %629 = vmatprep.subr.mxu0 0.0
        %630 = vmatpush1.xpose.msra.mxu0 0.0
        %631 = vmatprep.subr.mxu0 0.0
        %632 = vmatpush1.xpose.msra.mxu0 0.0
        %633 = vmatprep.subr.mxu0 0.0
        %634 = vmatpush1.xpose.msra.mxu0 0.0
        %635 = vmatprep.subr.mxu0 0.0
        %636 = vmatpush1.xpose.msra.mxu0 0.0
        %637 = vmatprep.subr.mxu0 0.0
        %638 = vmatpush1.xpose.msra.mxu0 0.0
        %639 = vmatprep.subr.mxu0 0.0
        %640 = vmatpush1.xpose.msra.mxu0 0.0
        %641 = vmatprep.subr.mxu0 0.0
        %642 = vmatpush1.xpose.msra.mxu0 0.0
        %643 = vmatprep.subr.mxu0 0.0
        %644 = vmatpush1.xpose.msra.mxu0 0.0
        %645 = vmatprep.subr.mxu0 0.0
        %646 = vmatpush1.xpose.msra.mxu0 0.0
        %647 = vmatprep.subr.mxu0 0.0
        %648 = vmatpush1.xpose.msra.mxu0 0.0
        %649 = vmatprep.subr.mxu0 0.0
        %650 = vmatpush1.xpose.msra.mxu0 0.0
        %651 = vmatprep.subr.mxu0 0.0
        %652 = vmatpush1.xpose.msra.mxu0 0.0
        %653 = vmatprep.subr.mxu0 0.0
        %654 = vmatpush1.xpose.msra.mxu0 0.0
        %655 = vmatprep.subr.mxu0 0.0
        %656 = vmatpush1.xpose.msra.mxu0 0.0
        %657 = vmatprep.subr.mxu0 0.0
        %658 = vmatpush1.xpose.msra.mxu0 0.0
        %659 = vmatprep.subr.mxu0 0.0
        %660 = vmatpush1.xpose.msra.mxu0 0.0
        %661 = vmatprep.subr.mxu0 0.0
        %662 = vmatpush1.xpose.msra.mxu0 0.0
        %663 = vmatprep.subr.mxu0 0.0
        %664 = vmatpush1.xpose.msra.mxu0 0.0
        %665 = vmatprep.subr.mxu0 0.0
        %666 = vmatpush1.xpose.msra.mxu0 0.0
        %667 = vmatprep.subr.mxu0 0.0
        %668 = vmatpush1.xpose.msra.mxu0 0.0
        %669 = vmatprep.subr.mxu0 0.0
        %670 = vmatpush1.xpose.msra.mxu0 0.0
        %671 = vmatprep.subr.mxu0 0.0
        %672 = vmatpush1.xpose.msra.mxu0 0.0
        %673 = vmatprep.subr.mxu0 0.0
        %674 = vmatpush1.xpose.msra.mxu0 0.0
        %675 = vmatprep.subr.mxu0 0.0
        %676 = vmatpush1.xpose.msra.mxu0 0.0
        %677 = vmatprep.subr.mxu0 0.0
        %678 = vmatpush1.xpose.msra.mxu0 0.0
        %679 = vmatprep.subr.mxu0 0.0
        %680 = vmatpush1.xpose.msra.mxu0 0.0
        %681 = vmatprep.mubr.f32.mxu0 0.0
        %682 = vmatmul.mubr.f32.gmra.mrb[0].mxu0 %v613
        %v683 = vpop.f32.mrb[0].mxu0
        %v684 = vadd.f32 %v360, %v683
        %v685 = vpop.f32.mrb[0].mxu0
        %686 = vdwg.mxu0
        %v687 = vsel %vm371, %v684, -inf
        %688 = vmax.xlane.f32.xlu0 %v687
        %v689 = vpop.xlane.xlu0 %688
        %v690 = vsub.f32 %v684, %v689
        %v691 = vmul.f32 %v690, 1.442695
        %v692 = vpow.pop %v691
        %v693 = vsel %vm371, %v692, 0.0
        %694 = vadd.xlane.f32.xlu0 %v693
        %v695 = vpop.xlane.xlu0 %694
        %v696 = vrcp.pop %v695
        %v697 = vmul.f32 %v695, %v696
        %v698 = vsub.f32 2.0, %v697
        %v699 = vmul.f32 %v696, %v698
        %v700 = vmul.f32 %v692, %v699
        %v701 = vld [vmem:[#allocation7 + $0x8] sm:$0xff]
        %702 = vrot.lane.b32.xlu0 %v352, 56
        %v703 = vpop.permute.xlu0 %702
        %v704 = vsel %vm371, %v703, 0
        %706 = vmatprep.subr.mxu0 0.0
        %707 = vmatpush1.msra.mxu0 %v701
        %708 = vmatprep.subr.mxu0 0.0
        %709 = vmatpush1.msra.mxu0 0.0
        %710 = vmatprep.subr.mxu0 0.0
        %711 = vmatpush1.msra.mxu0 0.0
        %712 = vmatprep.subr.mxu0 0.0
        %713 = vmatpush1.msra.mxu0 0.0
        %714 = vmatprep.subr.mxu0 0.0
        %715 = vmatpush1.msra.mxu0 0.0
        %716 = vmatprep.subr.mxu0 0.0
        %717 = vmatpush1.msra.mxu0 0.0
        %718 = vmatprep.subr.mxu0 0.0
        %719 = vmatpush1.msra.mxu0 0.0
        %720 = vmatprep.subr.mxu0 0.0
        %721 = vmatpush1.msra.mxu0 0.0
        %722 = vmatprep.subr.mxu0 0.0
        %723 = vmatpush1.msra.mxu0 0.0
        %724 = vmatprep.subr.mxu0 0.0
        %725 = vmatpush1.msra.mxu0 0.0
        %726 = vmatprep.subr.mxu0 0.0
        %727 = vmatpush1.msra.mxu0 0.0
        %728 = vmatprep.subr.mxu0 0.0
        %729 = vmatpush1.msra.mxu0 0.0
        %730 = vmatprep.subr.mxu0 0.0
        %731 = vmatpush1.msra.mxu0 0.0
        %732 = vmatprep.subr.mxu0 0.0
        %733 = vmatpush1.msra.mxu0 0.0
        %734 = vmatprep.subr.mxu0 0.0
        %735 = vmatpush1.msra.mxu0 0.0
        %736 = vmatprep.subr.mxu0 0.0
        %737 = vmatpush1.msra.mxu0 0.0
        %738 = vmatprep.subr.mxu0 0.0
        %739 = vmatpush1.msra.mxu0 0.0
        %740 = vmatprep.subr.mxu0 0.0
        %741 = vmatpush1.msra.mxu0 0.0
        %742 = vmatprep.subr.mxu0 0.0
        %743 = vmatpush1.msra.mxu0 0.0
        %744 = vmatprep.subr.mxu0 0.0
        %745 = vmatpush1.msra.mxu0 0.0
        %746 = vmatprep.subr.mxu0 0.0
        %747 = vmatpush1.msra.mxu0 0.0
        %748 = vmatprep.subr.mxu0 0.0
        %749 = vmatpush1.msra.mxu0 0.0
        %750 = vmatprep.subr.mxu0 0.0
        %751 = vmatpush1.msra.mxu0 0.0
        %752 = vmatprep.subr.mxu0 0.0
        %753 = vmatpush1.msra.mxu0 0.0
        %754 = vmatprep.subr.mxu0 0.0
        %755 = vmatpush1.msra.mxu0 0.0
        %756 = vmatprep.subr.mxu0 0.0
        %757 = vmatpush1.msra.mxu0 0.0
        %758 = vmatprep.subr.mxu0 0.0
        %759 = vmatpush1.msra.mxu0 0.0
        %760 = vmatprep.subr.mxu0 0.0
        %761 = vmatpush1.msra.mxu0 0.0
        %762 = vmatprep.subr.mxu0 0.0
        %763 = vmatpush1.msra.mxu0 0.0
        %764 = vmatprep.subr.mxu0 0.0
        %765 = vmatpush1.msra.mxu0 0.0
        %766 = vmatprep.subr.mxu0 0.0
        %767 = vmatpush1.msra.mxu0 0.0
        %768 = vmatprep.subr.mxu0 0.0
        %769 = vmatpush1.msra.mxu0 0.0
        %770 = vmatprep.mubr.f32.mxu0 0.0
        %771 = vmatmul.mubr.f32.gmra.mrb[0].mxu0 %v704
        %v772 = vpop.f32.mrb[0].mxu0
        %v773 = vadd.f32 0.0, %v772
        %v774 = vpop.f32.mrb[0].mxu0
        %775 = vdwg.mxu0
        %v777 = vsel %vm371, %v700, 0
        %779 = vmatprep.subr.mxu0 0.0
        %780 = vmatpush1.msra.mxu0 %v773
        %781 = vmatprep.subr.mxu0 0.0
        %782 = vmatpush1.msra.mxu0 0.0
        %783 = vmatprep.subr.mxu0 0.0
        %784 = vmatpush1.msra.mxu0 0.0
        %785 = vmatprep.subr.mxu0 0.0
        %786 = vmatpush1.msra.mxu0 0.0
        %787 = vmatprep.subr.mxu0 0.0
        %788 = vmatpush1.msra.mxu0 0.0
        %789 = vmatprep.subr.mxu0 0.0
        %790 = vmatpush1.msra.mxu0 0.0
        %791 = vmatprep.subr.mxu0 0.0
        %792 = vmatpush1.msra.mxu0 0.0
        %793 = vmatprep.subr.mxu0 0.0
        %794 = vmatpush1.msra.mxu0 0.0
        %795 = vmatprep.subr.mxu0 0.0
        %796 = vmatpush1.msra.mxu0 0.0
        %797 = vmatprep.subr.mxu0 0.0
        %798 = vmatpush1.msra.mxu0 0.0
        %799 = vmatprep.subr.mxu0 0.0
        %800 = vmatpush1.msra.mxu0 0.0
        %801 = vmatprep.subr.mxu0 0.0
        %802 = vmatpush1.msra.mxu0 0.0
        %803 = vmatprep.subr.mxu0 0.0
        %804 = vmatpush1.msra.mxu0 0.0
        %805 = vmatprep.subr.mxu0 0.0
        %806 = vmatpush1.msra.mxu0 0.0
        %807 = vmatprep.subr.mxu0 0.0
        %808 = vmatpush1.msra.mxu0 0.0
        %809 = vmatprep.subr.mxu0 0.0
        %810 = vmatpush1.msra.mxu0 0.0
        %811 = vmatprep.subr.mxu0 0.0
        %812 = vmatpush1.msra.mxu0 0.0
        %813 = vmatprep.subr.mxu0 0.0
        %814 = vmatpush1.msra.mxu0 0.0
        %815 = vmatprep.subr.mxu0 0.0
        %816 = vmatpush1.msra.mxu0 0.0
        %817 = vmatprep.subr.mxu0 0.0
        %818 = vmatpush1.msra.mxu0 0.0
        %819 = vmatprep.subr.mxu0 0.0
        %820 = vmatpush1.msra.mxu0 0.0
        %821 = vmatprep.subr.mxu0 0.0
        %822 = vmatpush1.msra.mxu0 0.0
        %823 = vmatprep.subr.mxu0 0.0
        %824 = vmatpush1.msra.mxu0 0.0
        %825 = vmatprep.subr.mxu0 0.0
        %826 = vmatpush1.msra.mxu0 0.0
        %827 = vmatprep.subr.mxu0 0.0
        %828 = vmatpush1.msra.mxu0 0.0
        %829 = vmatprep.subr.mxu0 0.0
        %830 = vmatpush1.msra.mxu0 0.0
        %831 = vmatprep.subr.mxu0 0.0
        %832 = vmatpush1.msra.mxu0 0.0
        %833 = vmatprep.subr.mxu0 0.0
        %834 = vmatpush1.msra.mxu0 0.0
        %835 = vmatprep.subr.mxu0 0.0
        %836 = vmatpush1.msra.mxu0 0.0
        %837 = vmatprep.subr.mxu0 0.0
        %838 = vmatpush1.msra.mxu0 0.0
        %839 = vmatprep.subr.mxu0 0.0
        %840 = vmatpush1.msra.mxu0 0.0
        %841 = vmatprep.subr.mxu0 0.0
        %842 = vmatpush1.msra.mxu0 0.0
        %843 = vmatprep.mubr.f32.mxu0 0.0
        %844 = vmatmul.mubr.f32.gmra.mrb[0].mxu0 %v777
        %v845 = vpop.f32.mrb[0].mxu0
        %v846 = vadd.f32 0.0, %v845
        %v847 = vpop.f32.mrb[0].mxu0
        %848 = vdwg.mxu0
        %v849 = vadd.f32 %v608, %v846
        %850 = vrot.lane.b32.xlu0 %v352, 112
        %v851 = vpop.permute.xlu0 %850
        %852 = vrot.lane.b32.xlu0 %v352, 80
        %v853 = vpop.permute.xlu0 %852
        %v854 = vsel %vm371, %v851, 0
        %v856 = vsel %vm371, %v853, 0
        %858 = vmatprep.subr.mxu0 0.0
        %859 = vmatpush1.xpose.msra.mxu0 %v856
        %860 = vmatprep.subr.mxu0 0.0
        %861 = vmatpush1.xpose.msra.mxu0 0.0
        %862 = vmatprep.subr.mxu0 0.0
        %863 = vmatpush1.xpose.msra.mxu0 0.0
        %864 = vmatprep.subr.mxu0 0.0
        %865 = vmatpush1.xpose.msra.mxu0 0.0
        %866 = vmatprep.subr.mxu0 0.0
        %867 = vmatpush1.xpose.msra.mxu0 0.0
        %868 = vmatprep.subr.mxu0 0.0
        %869 = vmatpush1.xpose.msra.mxu0 0.0
        %870 = vmatprep.subr.mxu0 0.0
        %871 = vmatpush1.xpose.msra.mxu0 0.0
        %872 = vmatprep.subr.mxu0 0.0
        %873 = vmatpush1.xpose.msra.mxu0 0.0
        %874 = vmatprep.subr.mxu0 0.0
        %875 = vmatpush1.xpose.msra.mxu0 0.0
        %876 = vmatprep.subr.mxu0 0.0
        %877 = vmatpush1.xpose.msra.mxu0 0.0
        %878 = vmatprep.subr.mxu0 0.0
        %879 = vmatpush1.xpose.msra.mxu0 0.0
        %880 = vmatprep.subr.mxu0 0.0
        %881 = vmatpush1.xpose.msra.mxu0 0.0
        %882 = vmatprep.subr.mxu0 0.0
        %883 = vmatpush1.xpose.msra.mxu0 0.0
        %884 = vmatprep.subr.mxu0 0.0
        %885 = vmatpush1.xpose.msra.mxu0 0.0
        %886 = vmatprep.subr.mxu0 0.0
        %887 = vmatpush1.xpose.msra.mxu0 0.0
        %888 = vmatprep.subr.mxu0 0.0
        %889 = vmatpush1.xpose.msra.mxu0 0.0
        %890 = vmatprep.subr.mxu0 0.0
        %891 = vmatpush1.xpose.msra.mxu0 0.0
        %892 = vmatprep.subr.mxu0 0.0
        %893 = vmatpush1.xpose.msra.mxu0 0.0
        %894 = vmatprep.subr.mxu0 0.0
        %895 = vmatpush1.xpose.msra.mxu0 0.0
        %896 = vmatprep.subr.mxu0 0.0
        %897 = vmatpush1.xpose.msra.mxu0 0.0
        %898 = vmatprep.subr.mxu0 0.0
        %899 = vmatpush1.xpose.msra.mxu0 0.0
        %900 = vmatprep.subr.mxu0 0.0
        %901 = vmatpush1.xpose.msra.mxu0 0.0
        %902 = vmatprep.subr.mxu0 0.0
        %903 = vmatpush1.xpose.msra.mxu0 0.0
        %904 = vmatprep.subr.mxu0 0.0
        %905 = vmatpush1.xpose.msra.mxu0 0.0
        %906 = vmatprep.subr.mxu0 0.0
        %907 = vmatpush1.xpose.msra.mxu0 0.0
        %908 = vmatprep.subr.mxu0 0.0
        %909 = vmatpush1.xpose.msra.mxu0 0.0
        %910 = vmatprep.subr.mxu0 0.0
        %911 = vmatpush1.xpose.msra.mxu0 0.0
        %912 = vmatprep.subr.mxu0 0.0
        %913 = vmatpush1.xpose.msra.mxu0 0.0
        %914 = vmatprep.subr.mxu0 0.0
        %915 = vmatpush1.xpose.msra.mxu0 0.0
        %916 = vmatprep.subr.mxu0 0.0
        %917 = vmatpush1.xpose.msra.mxu0 0.0
        %918 = vmatprep.subr.mxu0 0.0
        %919 = vmatpush1.xpose.msra.mxu0 0.0
        %920 = vmatprep.subr.mxu0 0.0
        %921 = vmatpush1.xpose.msra.mxu0 0.0
        %922 = vmatprep.mubr.f32.mxu0 0.0
        %923 = vmatmul.mubr.f32.gmra.mrb[0].mxu0 %v854
        %v924 = vpop.f32.mrb[0].mxu0
        %v925 = vadd.f32 %v360, %v924
        %v926 = vpop.f32.mrb[0].mxu0
        %927 = vdwg.mxu0
        %v928 = vsel %vm371, %v925, -inf
        %929 = vmax.xlane.f32.xlu0 %v928
        %v930 = vpop.xlane.xlu0 %929
        %v931 = vsub.f32 %v925, %v930
        %v932 = vmul.f32 %v931, 1.442695
        %v933 = vpow.pop %v932
        %v934 = vsel %vm371, %v933, 0.0
        %935 = vadd.xlane.f32.xlu0 %v934
        %v936 = vpop.xlane.xlu0 %935
        %v937 = vrcp.pop %v936
        %v938 = vmul.f32 %v936, %v937
        %v939 = vsub.f32 2.0, %v938
        %v940 = vmul.f32 %v937, %v939
        %v941 = vmul.f32 %v933, %v940
        %v942 = vld [vmem:[#allocation7 + $0x10] sm:$0xff]
        %943 = vrot.lane.b32.xlu0 %v352, 48
        %v944 = vpop.permute.xlu0 %943
        %v945 = vsel %vm371, %v944, 0
        %947 = vmatprep.subr.mxu0 0.0
        %948 = vmatpush1.msra.mxu0 %v942
        %949 = vmatprep.subr.mxu0 0.0
        %950 = vmatpush1.msra.mxu0 0.0
        %951 = vmatprep.subr.mxu0 0.0
        %952 = vmatpush1.msra.mxu0 0.0
        %953 = vmatprep.subr.mxu0 0.0
        %954 = vmatpush1.msra.mxu0 0.0
        %955 = vmatprep.subr.mxu0 0.0
        %956 = vmatpush1.msra.mxu0 0.0
        %957 = vmatprep.subr.mxu0 0.0
        %958 = vmatpush1.msra.mxu0 0.0
        %959 = vmatprep.subr.mxu0 0.0
        %960 = vmatpush1.msra.mxu0 0.0
        %961 = vmatprep.subr.mxu0 0.0
        %962 = vmatpush1.msra.mxu0 0.0
        %963 = vmatprep.subr.mxu0 0.0
        %964 = vmatpush1.msra.mxu0 0.0
        %965 = vmatprep.subr.mxu0 0.0
        %966 = vmatpush1.msra.mxu0 0.0
        %967 = vmatprep.subr.mxu0 0.0
        %968 = vmatpush1.msra.mxu0 0.0
        %969 = vmatprep.subr.mxu0 0.0
        %970 = vmatpush1.msra.mxu0 0.0
        %971 = vmatprep.subr.mxu0 0.0
        %972 = vmatpush1.msra.mxu0 0.0
        %973 = vmatprep.subr.mxu0 0.0
        %974 = vmatpush1.msra.mxu0 0.0
        %975 = vmatprep.subr.mxu0 0.0
        %976 = vmatpush1.msra.mxu0 0.0
        %977 = vmatprep.subr.mxu0 0.0
        %978 = vmatpush1.msra.mxu0 0.0
        %979 = vmatprep.subr.mxu0 0.0
        %980 = vmatpush1.msra.mxu0 0.0
        %981 = vmatprep.subr.mxu0 0.0
        %982 = vmatpush1.msra.mxu0 0.0
        %983 = vmatprep.subr.mxu0 0.0
        %984 = vmatpush1.msra.mxu0 0.0
        %985 = vmatprep.subr.mxu0 0.0
        %986 = vmatpush1.msra.mxu0 0.0
        %987 = vmatprep.subr.mxu0 0.0
        %988 = vmatpush1.msra.mxu0 0.0
        %989 = vmatprep.subr.mxu0 0.0
        %990 = vmatpush1.msra.mxu0 0.0
        %991 = vmatprep.subr.mxu0 0.0
        %992 = vmatpush1.msra.mxu0 0.0
        %993 = vmatprep.subr.mxu0 0.0
        %994 = vmatpush1.msra.mxu0 0.0
        %995 = vmatprep.subr.mxu0 0.0
        %996 = vmatpush1.msra.mxu0 0.0
        %997 = vmatprep.subr.mxu0 0.0
        %998 = vmatpush1.msra.mxu0 0.0
        %999 = vmatprep.subr.mxu0 0.0
        %1000 = vmatpush1.msra.mxu0 0.0
        %1001 = vmatprep.subr.mxu0 0.0
        %1002 = vmatpush1.msra.mxu0 0.0
        %1003 = vmatprep.subr.mxu0 0.0
        %1004 = vmatpush1.msra.mxu0 0.0
        %1005 = vmatprep.subr.mxu0 0.0
        %1006 = vmatpush1.msra.mxu0 0.0
        %1007 = vmatprep.subr.mxu0 0.0
        %1008 = vmatpush1.msra.mxu0 0.0
        %1009 = vmatprep.subr.mxu0 0.0
        %1010 = vmatpush1.msra.mxu0 0.0
        %1011 = vmatprep.mubr.f32.mxu0 0.0
        %1012 = vmatmul.mubr.f32.gmra.mrb[0].mxu0 %v945
        %v1013 = vpop.f32.mrb[0].mxu0
        %v1014 = vadd.f32 0.0, %v1013
        %v1015 = vpop.f32.mrb[0].mxu0
        %1016 = vdwg.mxu0
        %v1018 = vsel %vm371, %v941, 0
        %1020 = vmatprep.subr.mxu0 0.0
        %1021 = vmatpush1.msra.mxu0 %v1014
        %1022 = vmatprep.subr.mxu0 0.0
        %1023 = vmatpush1.msra.mxu0 0.0
        %1024 = vmatprep.subr.mxu0 0.0
        %1025 = vmatpush1.msra.mxu0 0.0
        %1026 = vmatprep.subr.mxu0 0.0
        %1027 = vmatpush1.msra.mxu0 0.0
        %1028 = vmatprep.subr.mxu0 0.0
        %1029 = vmatpush1.msra.mxu0 0.0
        %1030 = vmatprep.subr.mxu0 0.0
        %1031 = vmatpush1.msra.mxu0 0.0
        %1032 = vmatprep.subr.mxu0 0.0
        %1033 = vmatpush1.msra.mxu0 0.0
        %1034 = vmatprep.subr.mxu0 0.0
        %1035 = vmatpush1.msra.mxu0 0.0
        %1036 = vmatprep.subr.mxu0 0.0
        %1037 = vmatpush1.msra.mxu0 0.0
        %1038 = vmatprep.subr.mxu0 0.0
        %1039 = vmatpush1.msra.mxu0 0.0
        %1040 = vmatprep.subr.mxu0 0.0
        %1041 = vmatpush1.msra.mxu0 0.0
        %1042 = vmatprep.subr.mxu0 0.0
        %1043 = vmatpush1.msra.mxu0 0.0
        %1044 = vmatprep.subr.mxu0 0.0
        %1045 = vmatpush1.msra.mxu0 0.0
        %1046 = vmatprep.subr.mxu0 0.0
        %1047 = vmatpush1.msra.mxu0 0.0
        %1048 = vmatprep.subr.mxu0 0.0
        %1049 = vmatpush1.msra.mxu0 0.0
        %1050 = vmatprep.subr.mxu0 0.0
        %1051 = vmatpush1.msra.mxu0 0.0
        %1052 = vmatprep.subr.mxu0 0.0
        %1053 = vmatpush1.msra.mxu0 0.0
        %1054 = vmatprep.subr.mxu0 0.0
        %1055 = vmatpush1.msra.mxu0 0.0
        %1056 = vmatprep.subr.mxu0 0.0
        %1057 = vmatpush1.msra.mxu0 0.0
        %1058 = vmatprep.subr.mxu0 0.0
        %1059 = vmatpush1.msra.mxu0 0.0
        %1060 = vmatprep.subr.mxu0 0.0
        %1061 = vmatpush1.msra.mxu0 0.0
        %1062 = vmatprep.subr.mxu0 0.0
        %1063 = vmatpush1.msra.mxu0 0.0
        %1064 = vmatprep.subr.mxu0 0.0
        %1065 = vmatpush1.msra.mxu0 0.0
        %1066 = vmatprep.subr.mxu0 0.0
        %1067 = vmatpush1.msra.mxu0 0.0
        %1068 = vmatprep.subr.mxu0 0.0
        %1069 = vmatpush1.msra.mxu0 0.0
        %1070 = vmatprep.subr.mxu0 0.0
        %1071 = vmatpush1.msra.mxu0 0.0
        %1072 = vmatprep.subr.mxu0 0.0
        %1073 = vmatpush1.msra.mxu0 0.0
        %1074 = vmatprep.subr.mxu0 0.0
        %1075 = vmatpush1.msra.mxu0 0.0
        %1076 = vmatprep.subr.mxu0 0.0
        %1077 = vmatpush1.msra.mxu0 0.0
        %1078 = vmatprep.subr.mxu0 0.0
        %1079 = vmatpush1.msra.mxu0 0.0
        %1080 = vmatprep.subr.mxu0 0.0
        %1081 = vmatpush1.msra.mxu0 0.0
        %1082 = vmatprep.subr.mxu0 0.0
        %1083 = vmatpush1.msra.mxu0 0.0
        %1084 = vmatprep.mubr.f32.mxu0 0.0
        %1085 = vmatmul.mubr.f32.gmra.mrb[0].mxu0 %v1018
        %v1086 = vpop.f32.mrb[0].mxu0
        %v1087 = vadd.f32 0.0, %v1086
        %v1088 = vpop.f32.mrb[0].mxu0
        %1089 = vdwg.mxu0
        %v1090 = vadd.f32 %v849, %v1087
        %1091 = vrot.lane.b32.xlu0 %v352, 104
        %v1092 = vpop.permute.xlu0 %1091
        %1093 = vrot.lane.b32.xlu0 %v352, 72
        %v1094 = vpop.permute.xlu0 %1093
        %v1095 = vsel %vm371, %v1092, 0
        %v1097 = vsel %vm371, %v1094, 0
        %1099 = vmatprep.subr.mxu0 0.0
        %1100 = vmatpush1.xpose.msra.mxu0 %v1097
        %1101 = vmatprep.subr.mxu0 0.0
        %1102 = vmatpush1.xpose.msra.mxu0 0.0
        %1103 = vmatprep.subr.mxu0 0.0
        %1104 = vmatpush1.xpose.msra.mxu0 0.0
        %1105 = vmatprep.subr.mxu0 0.0
        %1106 = vmatpush1.xpose.msra.mxu0 0.0
        %1107 = vmatprep.subr.mxu0 0.0
        %1108 = vmatpush1.xpose.msra.mxu0 0.0
        %1109 = vmatprep.subr.mxu0 0.0
        %1110 = vmatpush1.xpose.msra.mxu0 0.0
        %1111 = vmatprep.subr.mxu0 0.0
        %1112 = vmatpush1.xpose.msra.mxu0 0.0
        %1113 = vmatprep.subr.mxu0 0.0
        %1114 = vmatpush1.xpose.msra.mxu0 0.0
        %1115 = vmatprep.subr.mxu0 0.0
        %1116 = vmatpush1.xpose.msra.mxu0 0.0
        %1117 = vmatprep.subr.mxu0 0.0
        %1118 = vmatpush1.xpose.msra.mxu0 0.0
        %1119 = vmatprep.subr.mxu0 0.0
        %1120 = vmatpush1.xpose.msra.mxu0 0.0
        %1121 = vmatprep.subr.mxu0 0.0
        %1122 = vmatpush1.xpose.msra.mxu0 0.0
        %1123 = vmatprep.subr.mxu0 0.0
        %1124 = vmatpush1.xpose.msra.mxu0 0.0
        %1125 = vmatprep.subr.mxu0 0.0
        %1126 = vmatpush1.xpose.msra.mxu0 0.0
        %1127 = vmatprep.subr.mxu0 0.0
        %1128 = vmatpush1.xpose.msra.mxu0 0.0
        %1129 = vmatprep.subr.mxu0 0.0
        %1130 = vmatpush1.xpose.msra.mxu0 0.0
        %1131 = vmatprep.subr.mxu0 0.0
        %1132 = vmatpush1.xpose.msra.mxu0 0.0
        %1133 = vmatprep.subr.mxu0 0.0
        %1134 = vmatpush1.xpose.msra.mxu0 0.0
        %1135 = vmatprep.subr.mxu0 0.0
        %1136 = vmatpush1.xpose.msra.mxu0 0.0
        %1137 = vmatprep.subr.mxu0 0.0
        %1138 = vmatpush1.xpose.msra.mxu0 0.0
        %1139 = vmatprep.subr.mxu0 0.0
        %1140 = vmatpush1.xpose.msra.mxu0 0.0
        %1141 = vmatprep.subr.mxu0 0.0
        %1142 = vmatpush1.xpose.msra.mxu0 0.0
        %1143 = vmatprep.subr.mxu0 0.0
        %1144 = vmatpush1.xpose.msra.mxu0 0.0
        %1145 = vmatprep.subr.mxu0 0.0
        %1146 = vmatpush1.xpose.msra.mxu0 0.0
        %1147 = vmatprep.subr.mxu0 0.0
        %1148 = vmatpush1.xpose.msra.mxu0 0.0
        %1149 = vmatprep.subr.mxu0 0.0
        %1150 = vmatpush1.xpose.msra.mxu0 0.0
        %1151 = vmatprep.subr.mxu0 0.0
        %1152 = vmatpush1.xpose.msra.mxu0 0.0
        %1153 = vmatprep.subr.mxu0 0.0
        %1154 = vmatpush1.xpose.msra.mxu0 0.0
        %1155 = vmatprep.subr.mxu0 0.0
        %1156 = vmatpush1.xpose.msra.mxu0 0.0
        %1157 = vmatprep.subr.mxu0 0.0
        %1158 = vmatpush1.xpose.msra.mxu0 0.0
        %1159 = vmatprep.subr.mxu0 0.0
        %1160 = vmatpush1.xpose.msra.mxu0 0.0
        %1161 = vmatprep.subr.mxu0 0.0
        %1162 = vmatpush1.xpose.msra.mxu0 0.0
        %1163 = vmatprep.mubr.f32.mxu0 0.0
        %1164 = vmatmul.mubr.f32.gmra.mrb[0].mxu0 %v1095
        %v1165 = vpop.f32.mrb[0].mxu0
        %v1166 = vadd.f32 %v360, %v1165
        %v1167 = vpop.f32.mrb[0].mxu0
        %1168 = vdwg.mxu0
        %v1169 = vsel %vm371, %v1166, -inf
        %1170 = vmax.xlane.f32.xlu0 %v1169
        %v1171 = vpop.xlane.xlu0 %1170
        %v1172 = vsub.f32 %v1166, %v1171
        %v1173 = vmul.f32 %v1172, 1.442695
        %v1174 = vpow.pop %v1173
        %v1175 = vsel %vm371, %v1174, 0.0
        %1176 = vadd.xlane.f32.xlu0 %v1175
        %v1177 = vpop.xlane.xlu0 %1176
        %v1178 = vrcp.pop %v1177
        %v1179 = vmul.f32 %v1177, %v1178
        %v1180 = vsub.f32 2.0, %v1179
        %v1181 = vmul.f32 %v1178, %v1180
        %v1182 = vmul.f32 %v1174, %v1181
        %v1183 = vld [vmem:[#allocation7 + $0x18] sm:$0xff]
        %1184 = vrot.lane.b32.xlu0 %v352, 40
        %v1185 = vpop.permute.xlu0 %1184
        %v1186 = vsel %vm371, %v1185, 0
        %1188 = vmatprep.subr.mxu0 0.0
        %1189 = vmatpush1.msra.mxu0 %v1183
        %1190 = vmatprep.subr.mxu0 0.0
        %1191 = vmatpush1.msra.mxu0 0.0
        %1192 = vmatprep.subr.mxu0 0.0
        %1193 = vmatpush1.msra.mxu0 0.0
        %1194 = vmatprep.subr.mxu0 0.0
        %1195 = vmatpush1.msra.mxu0 0.0
        %1196 = vmatprep.subr.mxu0 0.0
        %1197 = vmatpush1.msra.mxu0 0.0
        %1198 = vmatprep.subr.mxu0 0.0
        %1199 = vmatpush1.msra.mxu0 0.0
        %1200 = vmatprep.subr.mxu0 0.0
        %1201 = vmatpush1.msra.mxu0 0.0
        %1202 = vmatprep.subr.mxu0 0.0
        %1203 = vmatpush1.msra.mxu0 0.0
        %1204 = vmatprep.subr.mxu0 0.0
        %1205 = vmatpush1.msra.mxu0 0.0
        %1206 = vmatprep.subr.mxu0 0.0
        %1207 = vmatpush1.msra.mxu0 0.0
        %1208 = vmatprep.subr.mxu0 0.0
        %1209 = vmatpush1.msra.mxu0 0.0
        %1210 = vmatprep.subr.mxu0 0.0
        %1211 = vmatpush1.msra.mxu0 0.0
        %1212 = vmatprep.subr.mxu0 0.0
        %1213 = vmatpush1.msra.mxu0 0.0
        %1214 = vmatprep.subr.mxu0 0.0
        %1215 = vmatpush1.msra.mxu0 0.0
        %1216 = vmatprep.subr.mxu0 0.0
        %1217 = vmatpush1.msra.mxu0 0.0
        %1218 = vmatprep.subr.mxu0 0.0
        %1219 = vmatpush1.msra.mxu0 0.0
        %1220 = vmatprep.subr.mxu0 0.0
        %1221 = vmatpush1.msra.mxu0 0.0
        %1222 = vmatprep.subr.mxu0 0.0
        %1223 = vmatpush1.msra.mxu0 0.0
        %1224 = vmatprep.subr.mxu0 0.0
        %1225 = vmatpush1.msra.mxu0 0.0
        %1226 = vmatprep.subr.mxu0 0.0
        %1227 = vmatpush1.msra.mxu0 0.0
        %1228 = vmatprep.subr.mxu0 0.0
        %1229 = vmatpush1.msra.mxu0 0.0
        %1230 = vmatprep.subr.mxu0 0.0
        %1231 = vmatpush1.msra.mxu0 0.0
        %1232 = vmatprep.subr.mxu0 0.0
        %1233 = vmatpush1.msra.mxu0 0.0
        %1234 = vmatprep.subr.mxu0 0.0
        %1235 = vmatpush1.msra.mxu0 0.0
        %1236 = vmatprep.subr.mxu0 0.0
        %1237 = vmatpush1.msra.mxu0 0.0
        %1238 = vmatprep.subr.mxu0 0.0
        %1239 = vmatpush1.msra.mxu0 0.0
        %1240 = vmatprep.subr.mxu0 0.0
        %1241 = vmatpush1.msra.mxu0 0.0
        %1242 = vmatprep.subr.mxu0 0.0
        %1243 = vmatpush1.msra.mxu0 0.0
        %1244 = vmatprep.subr.mxu0 0.0
        %1245 = vmatpush1.msra.mxu0 0.0
        %1246 = vmatprep.subr.mxu0 0.0
        %1247 = vmatpush1.msra.mxu0 0.0
        %1248 = vmatprep.subr.mxu0 0.0
        %1249 = vmatpush1.msra.mxu0 0.0
        %1250 = vmatprep.subr.mxu0 0.0
        %1251 = vmatpush1.msra.mxu0 0.0
        %1252 = vmatprep.mubr.f32.mxu0 0.0
        %1253 = vmatmul.mubr.f32.gmra.mrb[0].mxu0 %v1186
        %v1254 = vpop.f32.mrb[0].mxu0
        %v1255 = vadd.f32 0.0, %v1254
        %v1256 = vpop.f32.mrb[0].mxu0
        %1257 = vdwg.mxu0
        %v1259 = vsel %vm371, %v1182, 0
        %1261 = vmatprep.subr.mxu0 0.0
        %1262 = vmatpush1.msra.mxu0 %v1255
        %1263 = vmatprep.subr.mxu0 0.0
        %1264 = vmatpush1.msra.mxu0 0.0
        %1265 = vmatprep.subr.mxu0 0.0
        %1266 = vmatpush1.msra.mxu0 0.0
        %1267 = vmatprep.subr.mxu0 0.0
        %1268 = vmatpush1.msra.mxu0 0.0
        %1269 = vmatprep.subr.mxu0 0.0
        %1270 = vmatpush1.msra.mxu0 0.0
        %1271 = vmatprep.subr.mxu0 0.0
        %1272 = vmatpush1.msra.mxu0 0.0
        %1273 = vmatprep.subr.mxu0 0.0
        %1274 = vmatpush1.msra.mxu0 0.0
        %1275 = vmatprep.subr.mxu0 0.0
        %1276 = vmatpush1.msra.mxu0 0.0
        %1277 = vmatprep.subr.mxu0 0.0
        %1278 = vmatpush1.msra.mxu0 0.0
        %1279 = vmatprep.subr.mxu0 0.0
        %1280 = vmatpush1.msra.mxu0 0.0
        %1281 = vmatprep.subr.mxu0 0.0
        %1282 = vmatpush1.msra.mxu0 0.0
        %1283 = vmatprep.subr.mxu0 0.0
        %1284 = vmatpush1.msra.mxu0 0.0
        %1285 = vmatprep.subr.mxu0 0.0
        %1286 = vmatpush1.msra.mxu0 0.0
        %1287 = vmatprep.subr.mxu0 0.0
        %1288 = vmatpush1.msra.mxu0 0.0
        %1289 = vmatprep.subr.mxu0 0.0
        %1290 = vmatpush1.msra.mxu0 0.0
        %1291 = vmatprep.subr.mxu0 0.0
        %1292 = vmatpush1.msra.mxu0 0.0
        %1293 = vmatprep.subr.mxu0 0.0
        %1294 = vmatpush1.msra.mxu0 0.0
        %1295 = vmatprep.subr.mxu0 0.0
        %1296 = vmatpush1.msra.mxu0 0.0
        %1297 = vmatprep.subr.mxu0 0.0
        %1298 = vmatpush1.msra.mxu0 0.0
        %1299 = vmatprep.subr.mxu0 0.0
        %1300 = vmatpush1.msra.mxu0 0.0
        %1301 = vmatprep.subr.mxu0 0.0
        %1302 = vmatpush1.msra.mxu0 0.0
        %1303 = vmatprep.subr.mxu0 0.0
        %1304 = vmatpush1.msra.mxu0 0.0
        %1305 = vmatprep.subr.mxu0 0.0
        %1306 = vmatpush1.msra.mxu0 0.0
        %1307 = vmatprep.subr.mxu0 0.0
        %1308 = vmatpush1.msra.mxu0 0.0
        %1309 = vmatprep.subr.mxu0 0.0
        %1310 = vmatpush1.msra.mxu0 0.0
        %1311 = vmatprep.subr.mxu0 0.0
        %1312 = vmatpush1.msra.mxu0 0.0
        %1313 = vmatprep.subr.mxu0 0.0
        %1314 = vmatpush1.msra.mxu0 0.0
        %1315 = vmatprep.subr.mxu0 0.0
        %1316 = vmatpush1.msra.mxu0 0.0
        %1317 = vmatprep.subr.mxu0 0.0
        %1318 = vmatpush1.msra.mxu0 0.0
        %1319 = vmatprep.subr.mxu0 0.0
        %1320 = vmatpush1.msra.mxu0 0.0
        %1321 = vmatprep.subr.mxu0 0.0
        %1322 = vmatpush1.msra.mxu0 0.0
        %1323 = vmatprep.subr.mxu0 0.0
        %1324 = vmatpush1.msra.mxu0 0.0
        %1325 = vmatprep.mubr.f32.mxu0 0.0
        %1326 = vmatmul.mubr.f32.gmra.mrb[0].mxu0 %v1259
        %v1327 = vpop.f32.mrb[0].mxu0
        %v1328 = vadd.f32 0.0, %v1327
        %v1329 = vpop.f32.mrb[0].mxu0
        %1330 = vdwg.mxu0
        %v1331 = vadd.f32 %v1090, %v1328
        %1332 = vst [vmem:[%s268] sm:$0xff] %v1331
        %s1333 = sand.u32 %s141, 1
        %s1334 = scalar_lea.sflag [#allocation4], %s1333
        %s1335 = sand.u32 %s141, 1
        %s1336 = smul.addr %s1335, 8
        %s1337 = scalar_lea.vmem [#allocation8], %s1336
        // Predicated region
        $region53: #{tpu_custom_call.1} parent=39 // pred_check
          %p1338 = pneg %p151
        $region54: #{tpu_custom_call.1} parent=39 // pred_check_branch
          %1340 = sbr.rel (%p1338) target = $region56
        $region55: #{tpu_custom_call.1} parent=39 // pred_region
          %s1342 = ssub.s32 128, 128
          %1343 = vsyncadd %s1334, %s1342
          %s1344 = smul.addr %s23, 128
          %s1345 = scalar_lea.hbm %s5, %s1344
          %s1347 = sshll.u32 %s1337, 4
          %s1348 = int_to_ptr.vmem [resolvable:$true] %s1347
          %1350 = dma.vmem_to_hbm [thread:$0]  %s1348, 128, %s1345, %s1334
        $region56: #{tpu_custom_call.1} parent=39 // pred_fallthru
          _
      $region40: #{tpu_custom_call.1} parent=5 // pred_fallthru
        _
      %p1351 = scmp.le.s32.totalorder 2, %s18
      // Predicated region
      $region57: #{tpu_custom_call.1} parent=5 // pred_check
        %p1352 = pneg %p1351
      $region58: #{tpu_custom_call.1} parent=5 // pred_check_branch
        %1354 = sbr.rel (%p1352) target = $region60
      $region59: #{tpu_custom_call.1} parent=5 // pred_region
        %s1355 = ssub.s32 %s18, 2
        // Predicated region
        $region61: #{tpu_custom_call.1} parent=59 // pred_check
          %p1356 = pneg %p157
        $region62: #{tpu_custom_call.1} parent=59 // pred_check_branch
          %1358 = sbr.rel (%p1356) target = $region64
        $region63: #{tpu_custom_call.1} parent=59 // pred_region
          %s1359 = sand.u32 %s142, 1
          %s1360 = scalar_lea.sflag [#allocation4], %s1359
          %s1361 = sand.u32 %s142, 1
          %s1362 = smul.addr %s1361, 8
          %s1363 = scalar_lea.vmem [#allocation8], %s1362
          %1364 = dma.done %s1360, 128
        $region64: #{tpu_custom_call.1} parent=59 // pred_fallthru
          _
      $region60: #{tpu_custom_call.1} parent=5 // pred_fallthru
        _
    $region6: #{tpu_custom_call.1} parent=1 // loop_footer
      %s22 = sadd.s32 1, %s18
    $region7: #{tpu_custom_call.1} parent=1 // loop_footer_branch
      %17 = sbr.rel target = $region3
    $region8: #{tpu_custom_call.1} parent=1 // loop_exit
      _
    %1365 = vsyncpa [#allocation3], 1
    %s1366 = scalar_lea.sflag [#allocation3], 1
    %1367 = vsyncpa %s1366, 1
    %1368 = vsyncpa [#allocation6], 1
    %1369 = vsyncpa [#allocation4], 1
    %s1370 = scalar_lea.sflag [#allocation4], 1
    %1371 = vsyncpa %s1370, 1

</llo_original>
